<compile_context>
chip_gen: v7x
topology: tpu7x:2x2x1
jax: 0.10.0
libtpu: 0.0.40
codegen_flags: <defaults>
</compile_context>

<pallas_src>
import jax
import jax.numpy as jnp
import numpy as np
from jax.experimental import pallas as pl
from jax.experimental.pallas import tpu as pltpu

INPUT_SIZE = 100
HIDDEN_SIZE = 128
EMBED_SIZE = 64

_LANE = 128
_SUBLANE = 8

PADDED_OUT = ((EMBED_SIZE + _LANE - 1) // _LANE) * _LANE   # 128


def _round_up(n, m):
    return ((n + m - 1) // m) * m


def _pick_batch_tile(batch, max_tile):
    """Batch tile: multiple of 8 (or == B for tiny B), <= B, bounded waste,
    and >= 2 grid steps whenever possible (v7x megacore)."""
    if batch <= _SUBLANE:
        return batch                       # full-dim block, always legal
    tile = min(max_tile, (batch // _SUBLANE) * _SUBLANE)
    if pl.cdiv(batch, tile) < 2:
        # Split the batch so dimension_semantics=("parallel",) can use both
        # TensorCores on v7x; never drop below one sublane.
        half = _round_up(pl.cdiv(batch, 2), _SUBLANE)
        tile = max(_SUBLANE, min(tile, half))
    return tile


def _mlp_kernel(x_ref, w1_ref, b1_ref, w2_ref, b2_ref, w3_ref, b3_ref, o_ref):
    # Fused 3-layer MLP on one batch tile.  Matmuls hit the MXU with f32
    # accumulation (HIGHEST precision), bias-add / ReLU run on the VPU.
    # The output store is a full 128-lane unmasked slab.
    hi = jax.lax.Precision.HIGHEST
    x = x_ref[...]

    h1 = jnp.dot(x, w1_ref[...], preferred_element_type=jnp.float32,
                 precision=hi) + b1_ref[...]
    h1 = jnp.maximum(h1, 0.0)

    h2 = jnp.dot(h1, w2_ref[...], preferred_element_type=jnp.float32,
                 precision=hi) + b2_ref[...]
    h2 = jnp.maximum(h2, 0.0)

    out = jnp.dot(h2, w3_ref[...], preferred_element_type=jnp.float32,
                  precision=hi) + b3_ref[...]
    o_ref[...] = out.astype(o_ref.dtype)


def prepare_params(params):
    """One-time (per model) kernel-ready params: pad the last layer's output
    dim 64 -> 128 with zeros so the kernel's store is lane-dense.  Do NOT call
    this per forward pass; cache the result next to the params."""
    w3p = jnp.zeros((HIDDEN_SIZE, PADDED_OUT), jnp.float32)
    w3p = w3p.at[:, :EMBED_SIZE].set(params["w3"])
    b3p = jnp.zeros((1, PADDED_OUT), jnp.float32)
    b3p = b3p.at[:, :EMBED_SIZE].set(params["b3"])
    return {
        "w1": params["w1"], "b1": params["b1"],
        "w2": params["w2"], "b2": params["b2"],
        "w3": w3p, "b3": b3p,
    }


def protonet_encode_padded(x, kparams, *, max_batch_tile=512):
    """Encoder forward; returns the zero-padded (B, 128) embedding slab.

    The extra 64 zero columns do not change prototype means or L2 distances,
    so downstream few-shot math can consume this directly without a slice.
    """
    x = x.reshape(x.shape[0], -1)          # matches x.view(x.size(0), -1)
    B, D = x.shape
    assert D == INPUT_SIZE, f"expected flattened input of {INPUT_SIZE}, got {D}"

    batch_tile = _pick_batch_tile(B, max_batch_tile)
    grid = (pl.cdiv(B, batch_tile),)       # partial last block: writes masked

    # Weights/biases: full-array blocks with a constant index_map so they stay
    # VMEM-resident across all grid steps (no per-step re-DMA).
    full2d = lambda arr: pl.BlockSpec(arr.shape, lambda i: (0, 0))

    out = pl.pallas_call(
        _mlp_kernel,
        out_shape=jax.ShapeDtypeStruct((B, PADDED_OUT), jnp.float32),
        grid_spec=pltpu.PrefetchScalarGridSpec(
            num_scalar_prefetch=0,
            grid=grid,
            in_specs=[
                # Last block dim == full array dim (100), so this is legal
                # without any feature padding; Mosaic handles the K remainder.
                pl.BlockSpec((batch_tile, INPUT_SIZE), lambda i: (i, 0)),
                full2d(kparams["w1"]), full2d(kparams["b1"]),
                full2d(kparams["w2"]), full2d(kparams["b2"]),
                full2d(kparams["w3"]), full2d(kparams["b3"]),
            ],
            out_specs=pl.BlockSpec((batch_tile, PADDED_OUT), lambda i: (i, 0)),
        ),
        compiler_params=pltpu.CompilerParams(
            dimension_semantics=("parallel",),
        ),
    )(x, kparams["w1"], kparams["b1"], kparams["w2"], kparams["b2"],
      kparams["w3"], kparams["b3"])
    return out


def protonet_forward(x, kparams, **kwargs):
    """API-parity forward: (B, EMBED_SIZE).  Prefer protonet_encode_padded()
    downstream to skip this slice."""
    return protonet_encode_padded(x, kparams, **kwargs)[:, :EMBED_SIZE]


def init_params(key):
    """Deterministic init mimicking nn.Linear's U(-1/sqrt(fan_in), 1/sqrt(fan_in))."""
    ks = jax.random.split(key, 6)

    def linear(kw, kb, fan_in, fan_out):
        bound = 1.0 / np.sqrt(fan_in)
        w = jax.random.uniform(kw, (fan_in, fan_out), jnp.float32, -bound, bound)
        b = jax.random.uniform(kb, (1, fan_out), jnp.float32, -bound, bound)
        return w, b

    w1, b1 = linear(ks[0], ks[1], INPUT_SIZE, HIDDEN_SIZE)
    w2, b2 = linear(ks[2], ks[3], HIDDEN_SIZE, HIDDEN_SIZE)
    w3, b3 = linear(ks[4], ks[5], HIDDEN_SIZE, EMBED_SIZE)
    return {"w1": w1, "b1": b1, "w2": w2, "b2": b2, "w3": w3, "b3": b3}


def reference_forward(x, p):
    hi = jax.lax.Precision.HIGHEST
    h1 = jnp.maximum(jnp.dot(x, p["w1"], precision=hi) + p["b1"], 0.0)
    h2 = jnp.maximum(jnp.dot(h1, p["w2"], precision=hi) + p["b2"], 0.0)
    return jnp.dot(h2, p["w3"], precision=hi) + p["b3"]


if __name__ == "__main__":
    key = jax.random.PRNGKey(0)
    k_params, k_x1, k_x2 = jax.random.split(key, 3)

    params = init_params(k_params)
    kparams = prepare_params(params)   # one-time weight prep, reused per call

    # Small batch of few-shot examples, already flat (B, input_size=100),
    # matching x.view(x.size(0), -1) in the PyTorch forward.
    B = 8
    x = jax.random.normal(k_x1, (B, INPUT_SIZE), jnp.float32)

    emb = jax.block_until_ready(protonet_forward(x, kparams))
    ref = reference_forward(x, params)
    np.testing.assert_allclose(np.asarray(emb), np.asarray(ref), rtol=1e-5, atol=1e-5)

    # Unaligned batch exercises the partial-last-block (masked writeback) path.
    B2 = 10
    x2 = jax.random.normal(k_x2, (B2, INPUT_SIZE), jnp.float32)
    emb2_pad = jax.block_until_ready(protonet_encode_padded(x2, kparams))
    # Padding columns are exactly zero (safe for prototype means / L2 dists).
    np.testing.assert_allclose(np.asarray(emb2_pad[:, EMBED_SIZE:]), 0.0)
    ref2 = reference_forward(x2, params)
    np.testing.assert_allclose(np.asarray(emb2_pad[:, :EMBED_SIZE]),
                               np.asarray(ref2), rtol=1e-5, atol=1e-5)

    # TODO(synk): compute_prototypes / prototypical_loss (masked mean, cdist,
    # log_softmax, nll_loss) are training-time utilities outside forward();
    # they can be fused onto the padded embedding slab in a follow-up kernel.
    print("KERNEL_OK")
</pallas_src>

<mosaic_0001>
module attributes {stable_mosaic.version = 11 : i64} {
  func.func @_mlp_kernel(%arg0: i32, %arg1: memref<8x100xf32, #tpu.memory_space<vmem>>, %arg2: memref<100x128xf32, #tpu.memory_space<vmem>>, %arg3: memref<1x128xf32, #tpu.memory_space<vmem>>, %arg4: memref<128x128xf32, #tpu.memory_space<vmem>>, %arg5: memref<1x128xf32, #tpu.memory_space<vmem>>, %arg6: memref<128x128xf32, #tpu.memory_space<vmem>>, %arg7: memref<1x128xf32, #tpu.memory_space<vmem>>, %arg8: memref<8x128xf32, #tpu.memory_space<vmem>>) attributes {dimension_semantics = [#tpu.dimension_semantics<parallel>], iteration_bounds = array<i64: 1>, scalar_prefetch = 0 : i64, scratch_operands = 0 : i64, tpu.core_type = #tpu.core_type<tc>, window_params = [{transform_indices = @transform_0, window_bounds = array<i64: 8, 100>}, {pipeline_mode = #tpu.pipeline_mode<synchronous>, transform_indices = @transform_1, window_bounds = array<i64: 100, 128>}, {pipeline_mode = #tpu.pipeline_mode<synchronous>, transform_indices = @transform_2, window_bounds = array<i64: 1, 128>}, {pipeline_mode = #tpu.pipeline_mode<synchronous>, transform_indices = @transform_3, window_bounds = array<i64: 128, 128>}, {pipeline_mode = #tpu.pipeline_mode<synchronous>, transform_indices = @transform_4, window_bounds = array<i64: 1, 128>}, {pipeline_mode = #tpu.pipeline_mode<synchronous>, transform_indices = @transform_5, window_bounds = array<i64: 128, 128>}, {pipeline_mode = #tpu.pipeline_mode<synchronous>, transform_indices = @transform_6, window_bounds = array<i64: 1, 128>}, {transform_indices = @transform_7, window_bounds = array<i64: 8, 128>}]} {
    %c0 = arith.constant 0 : index
    %c0_0 = arith.constant 0 : index
    %0 = vector.load %arg1[%c0, %c0_0] : memref<8x100xf32, #tpu.memory_space<vmem>>, vector<8x100xf32>
    %c0_1 = arith.constant 0 : index
    %c0_2 = arith.constant 0 : index
    %1 = vector.load %arg2[%c0_1, %c0_2] : memref<100x128xf32, #tpu.memory_space<vmem>>, vector<100x128xf32>
    %cst = arith.constant dense<0.000000e+00> : vector<8x128xf32>
    %2 = tpu.matmul %0, %1, %cst {dimension_numbers = #tpu.dot_dimension_numbers<[1], [0], [0], [1], [0, 0, 1, 1], [], []>, precision = #tpu.contract_precision<fp32>} : vector<8x100xf32>, vector<100x128xf32>, vector<8x128xf32> -> vector<8x128xf32>
    %c0_3 = arith.constant 0 : index
    %c0_4 = arith.constant 0 : index
    %3 = vector.load %arg3[%c0_3, %c0_4] : memref<1x128xf32, #tpu.memory_space<vmem>>, vector<1x128xf32>
    %4 = vector.broadcast %3 : vector<1x128xf32> to vector<8x128xf32>
    %5 = arith.addf %2, %4 : vector<8x128xf32>
    %cst_5 = arith.constant 0.000000e+00 : f32
    %6 = vector.broadcast %cst_5 : f32 to vector<8x128xf32>
    %7 = arith.maximumf %5, %6 : vector<8x128xf32>
    %c0_6 = arith.constant 0 : index
    %c0_7 = arith.constant 0 : index
    %8 = vector.load %arg4[%c0_6, %c0_7] : memref<128x128xf32, #tpu.memory_space<vmem>>, vector<128x128xf32>
    %cst_8 = arith.constant dense<0.000000e+00> : vector<8x128xf32>
    %9 = tpu.matmul %7, %8, %cst_8 {dimension_numbers = #tpu.dot_dimension_numbers<[1], [0], [0], [1], [0, 0, 1, 1], [], []>, precision = #tpu.contract_precision<fp32>} : vector<8x128xf32>, vector<128x128xf32>, vector<8x128xf32> -> vector<8x128xf32>
    %c0_9 = arith.constant 0 : index
    %c0_10 = arith.constant 0 : index
    %10 = vector.load %arg5[%c0_9, %c0_10] : memref<1x128xf32, #tpu.memory_space<vmem>>, vector<1x128xf32>
    %11 = vector.broadcast %10 : vector<1x128xf32> to vector<8x128xf32>
    %12 = arith.addf %9, %11 : vector<8x128xf32>
    %cst_11 = arith.constant 0.000000e+00 : f32
    %13 = vector.broadcast %cst_11 : f32 to vector<8x128xf32>
    %14 = arith.maximumf %12, %13 : vector<8x128xf32>
    %c0_12 = arith.constant 0 : index
    %c0_13 = arith.constant 0 : index
    %15 = vector.load %arg6[%c0_12, %c0_13] : memref<128x128xf32, #tpu.memory_space<vmem>>, vector<128x128xf32>
    %cst_14 = arith.constant dense<0.000000e+00> : vector<8x128xf32>
    %16 = tpu.matmul %14, %15, %cst_14 {dimension_numbers = #tpu.dot_dimension_numbers<[1], [0], [0], [1], [0, 0, 1, 1], [], []>, precision = #tpu.contract_precision<fp32>} : vector<8x128xf32>, vector<128x128xf32>, vector<8x128xf32> -> vector<8x128xf32>
    %c0_15 = arith.constant 0 : index
    %c0_16 = arith.constant 0 : index
    %17 = vector.load %arg7[%c0_15, %c0_16] : memref<1x128xf32, #tpu.memory_space<vmem>>, vector<1x128xf32>
    %18 = vector.broadcast %17 : vector<1x128xf32> to vector<8x128xf32>
    %19 = arith.addf %16, %18 : vector<8x128xf32>
    %c0_17 = arith.constant 0 : index
    %c0_18 = arith.constant 0 : index
    %20 = vector.load %arg8[%c0_17, %c0_18] : memref<8x128xf32, #tpu.memory_space<vmem>>, vector<8x128xf32>
    tpu.vector_store %arg8[%c0_17, %c0_18], %19 {strides = array<i32>} : memref<8x128xf32, #tpu.memory_space<vmem>>, vector<8x128xf32>,
    return
  }
  func.func @transform_0(%arg0: i32) -> (i32, i32) {
    %c0_i32 = arith.constant 0 : i32
    %c0_i32_0 = arith.constant 0 : i32
    return %arg0, %c0_i32 : i32, i32
  }
  func.func @transform_1(%arg0: i32) -> (i32, i32) {
    %c0_i32 = arith.constant 0 : i32
    %c0_i32_0 = arith.constant 0 : i32
    %c0_i32_1 = arith.constant 0 : i32
    return %c0_i32, %c0_i32_0 : i32, i32
  }
  func.func @transform_2(%arg0: i32) -> (i32, i32) {
    %c0_i32 = arith.constant 0 : i32
    %c0_i32_0 = arith.constant 0 : i32
    %c0_i32_1 = arith.constant 0 : i32
    return %c0_i32, %c0_i32_0 : i32, i32
  }
  func.func @transform_3(%arg0: i32) -> (i32, i32) {
    %c0_i32 = arith.constant 0 : i32
    %c0_i32_0 = arith.constant 0 : i32
    %c0_i32_1 = arith.constant 0 : i32
    return %c0_i32, %c0_i32_0 : i32, i32
  }
  func.func @transform_4(%arg0: i32) -> (i32, i32) {
    %c0_i32 = arith.constant 0 : i32
    %c0_i32_0 = arith.constant 0 : i32
    %c0_i32_1 = arith.constant 0 : i32
    return %c0_i32, %c0_i32_0 : i32, i32
  }
  func.func @transform_5(%arg0: i32) -> (i32, i32) {
    %c0_i32 = arith.constant 0 : i32
    %c0_i32_0 = arith.constant 0 : i32
    %c0_i32_1 = arith.constant 0 : i32
    return %c0_i32, %c0_i32_0 : i32, i32
  }
  func.func @transform_6(%arg0: i32) -> (i32, i32) {
    %c0_i32 = arith.constant 0 : i32
    %c0_i32_0 = arith.constant 0 : i32
    %c0_i32_1 = arith.constant 0 : i32
    return %c0_i32, %c0_i32_0 : i32, i32
  }
  func.func @transform_7(%arg0: i32) -> (i32, i32) {
    %c0_i32 = arith.constant 0 : i32
    %c0_i32_0 = arith.constant 0 : i32
    return %arg0, %c0_i32 : i32, i32
  }
}

</mosaic_0001>

<llo_original>
// kernel: tpu_custom_call.1
$region0: #{tpu_custom_call.1}
  #allocation0 [shape = 'u32[]', space=smem, size = 0x4, offset = 0x4, fixed_abs, tag = 'smem constant byte address 0x4 - core index']
  #allocation1 [shape = 'u32[144,128]{1,0:T(1,128)}', space=vmem, size = 0x12000, scoped, tag = 'internal scratch']
  %s0 = inlined_call_operand.hbm [shape: f32[8,100], index: 0, kind: input, shape index: {}]
  %s1 = inlined_call_operand.hbm [shape: f32[100,128], index: 1, kind: input, shape index: {}]
  %s2 = inlined_call_operand.vmem [shape: f32[1,128], index: 2, kind: input, shape index: {}]
  %s3 = inlined_call_operand.hbm [shape: f32[128,128], index: 3, kind: input, shape index: {}]
  %s4 = inlined_call_operand.vmem [shape: f32[1,128], index: 4, kind: input, shape index: {}]
  %s5 = inlined_call_operand.hbm [shape: f32[128,128], index: 5, kind: input, shape index: {}]
  %s6 = inlined_call_operand.vmem [shape: f32[1,128], index: 6, kind: input, shape index: {}]
  %s7 = inlined_call_operand.hbm [shape: f32[8,128], index: 7, kind: output, shape index: {}]
  %s8 = sld [smem:[#allocation0]]
  $region54: #{tpu_custom_call.1} parent=0
    _
  %s10 = ssub.s32 1, %s8
  %s11 = scalar_select 0, %s10, %s8
  $region1: #{tpu_custom_call.1} parent=0
    #allocation2 [shape = 'u8[4096]{0}', space=vmem, size = 0x1000, scoped, tag = 'input window, operand 0, single buffered']
    #allocation3 [shape = 's32[1]{0}', space=sflag, size = 0x4, scoped, tag = 'scoped memory for tpu_custom_call.1']
    #allocation4 [shape = 's32[1]{0}', space=sflag, size = 0x4, scoped, tag = 'scoped memory for tpu_custom_call.1']
    #allocation5 [shape = 'u8[53248]{0}', space=vmem, size = 0xd000, scoped, tag = 'input window, operand 1, single buffered']
    #allocation6 [shape = 's32[1]{0}', space=sflag, size = 0x4, scoped, tag = 'scoped memory for tpu_custom_call.1']
    #allocation7 [shape = 'u8[65536]{0}', space=vmem, size = 0x10000, scoped, tag = 'input window, operand 3, single buffered']
    #allocation8 [shape = 'u8[65536]{0}', space=vmem, size = 0x10000, scoped, tag = 'input window, operand 5, single buffered']
    #allocation9 [shape = 's32[1]{0}', space=sflag, size = 0x4, scoped, tag = 'scoped memory for tpu_custom_call.1']
    #allocation10 [shape = 'u8[4096]{0}', space=vmem, size = 0x1000, scoped, tag = 'output window, operand 0, single buffered']
    %12 = vsyncpa [#allocation3], 0
    %13 = vsyncpa [#allocation6], 0
    %14 = vsyncpa [#allocation9], 0
    %15 = vsyncpa [#allocation4], 0
    // Predicated region
    $region2: #{tpu_custom_call.1} parent=1 // pred_check
      _
    $region3: #{tpu_custom_call.1} parent=1 // pred_check_branch
      %17 = sbr.rel (0) target = $region5
    $region4: #{tpu_custom_call.1} parent=1 // pred_region
      %s19 = ssub.s32 128, 128
      %20 = vsyncadd [#allocation3], %s19
      %s22 = sshll.u32 [#allocation2], 4
      %s23 = int_to_ptr.vmem [resolvable:$true] %s22
      %25 = dma.hbm_to_vmem [thread:$0]  %s0, 128, %s23, [#allocation3]
    $region5: #{tpu_custom_call.1} parent=1 // pred_fallthru
      _
    // Predicated region
    $region6: #{tpu_custom_call.1} parent=1 // pred_check
      _
    $region7: #{tpu_custom_call.1} parent=1 // pred_check_branch
      %27 = sbr.rel (0) target = $region9
    $region8: #{tpu_custom_call.1} parent=1 // pred_region
      %s29 = ssub.s32 1664, 1664
      %30 = vsyncadd [#allocation6], %s29
      %s31 = sshll.u32 [#allocation5], 4
      %s32 = int_to_ptr.vmem [resolvable:$true] %s31
      %37 = dma.hbm_to_vmem [thread:$0]  %s1, 1664, %s32, [#allocation6], 128, 128, 8
    $region9: #{tpu_custom_call.1} parent=1 // pred_fallthru
      _
    // Predicated region
    $region10: #{tpu_custom_call.1} parent=1 // pred_check
      _
    $region11: #{tpu_custom_call.1} parent=1 // pred_check_branch
      %39 = sbr.rel (0) target = $region13
    $region12: #{tpu_custom_call.1} parent=1 // pred_region
      _
    $region13: #{tpu_custom_call.1} parent=1 // pred_fallthru
      _
    // Predicated region
    $region14: #{tpu_custom_call.1} parent=1 // pred_check
      _
    $region15: #{tpu_custom_call.1} parent=1 // pred_check_branch
      %41 = sbr.rel (0) target = $region17
    $region16: #{tpu_custom_call.1} parent=1 // pred_region
      %s43 = ssub.s32 2048, 2048
      %44 = vsyncadd [#allocation6], %s43
      %s45 = sshll.u32 [#allocation7], 4
      %s46 = int_to_ptr.vmem [resolvable:$true] %s45
      %51 = dma.hbm_to_vmem [thread:$0]  %s3, 2048, %s46, [#allocation6], 128, 128, 8
    $region17: #{tpu_custom_call.1} parent=1 // pred_fallthru
      _
    // Predicated region
    $region18: #{tpu_custom_call.1} parent=1 // pred_check
      _
    $region19: #{tpu_custom_call.1} parent=1 // pred_check_branch
      %53 = sbr.rel (0) target = $region21
    $region20: #{tpu_custom_call.1} parent=1 // pred_region
      _
    $region21: #{tpu_custom_call.1} parent=1 // pred_fallthru
      _
    // Predicated region
    $region22: #{tpu_custom_call.1} parent=1 // pred_check
      _
    $region23: #{tpu_custom_call.1} parent=1 // pred_check_branch
      %55 = sbr.rel (0) target = $region25
    $region24: #{tpu_custom_call.1} parent=1 // pred_region
      %s57 = ssub.s32 2048, 2048
      %58 = vsyncadd [#allocation9], %s57
      %s59 = sshll.u32 [#allocation8], 4
      %s60 = int_to_ptr.vmem [resolvable:$true] %s59
      %65 = dma.hbm_to_vmem [thread:$0]  %s5, 2048, %s60, [#allocation9], 128, 128, 8
    $region25: #{tpu_custom_call.1} parent=1 // pred_fallthru
      _
    // Predicated region
    $region26: #{tpu_custom_call.1} parent=1 // pred_check
      _
    $region27: #{tpu_custom_call.1} parent=1 // pred_check_branch
      %67 = sbr.rel (0) target = $region29
    $region28: #{tpu_custom_call.1} parent=1 // pred_region
      _
    $region29: #{tpu_custom_call.1} parent=1 // pred_fallthru
      _
    // Predicated region
    $region30: #{tpu_custom_call.1} parent=1 // pred_check
      _
    $region31: #{tpu_custom_call.1} parent=1 // pred_check_branch
      %69 = sbr.rel (0) target = $region33
    $region32: #{tpu_custom_call.1} parent=1 // pred_region
      %70 = dma.done [#allocation3], 128
    $region33: #{tpu_custom_call.1} parent=1 // pred_fallthru
      _
    // Predicated region
    $region34: #{tpu_custom_call.1} parent=1 // pred_check
      _
    $region35: #{tpu_custom_call.1} parent=1 // pred_check_branch
      %72 = sbr.rel (0) target = $region37
    $region36: #{tpu_custom_call.1} parent=1 // pred_region
      %73 = dma.done [#allocation6], 1664
    $region37: #{tpu_custom_call.1} parent=1 // pred_fallthru
      _
    // Predicated region
    $region38: #{tpu_custom_call.1} parent=1 // pred_check
      _
    $region39: #{tpu_custom_call.1} parent=1 // pred_check_branch
      %75 = sbr.rel (0) target = $region41
    $region40: #{tpu_custom_call.1} parent=1 // pred_region
      %76 = dma.done [#allocation6], 2048
    $region41: #{tpu_custom_call.1} parent=1 // pred_fallthru
      _
    // Predicated region
    $region42: #{tpu_custom_call.1} parent=1 // pred_check
      _
    $region43: #{tpu_custom_call.1} parent=1 // pred_check_branch
      %78 = sbr.rel (0) target = $region45
    $region44: #{tpu_custom_call.1} parent=1 // pred_region
      %79 = dma.done [#allocation9], 2048
    $region45: #{tpu_custom_call.1} parent=1 // pred_fallthru
      _
    %v80 = vld [vmem:[#allocation2] sm:$0xff]
    %v81 = vld [vmem:[#allocation5] sm:$0xff]
    %v82 = vld [vmem:[#allocation5 + $0x8] sm:$0xff]
    %v83 = vld [vmem:[#allocation5 + $0x10] sm:$0xff]
    %v84 = vld [vmem:[#allocation5 + $0x18] sm:$0xff]
    %v85 = vld [vmem:[#allocation5 + $0x20] sm:$0xff]
    %v86 = vld [vmem:[#allocation5 + $0x28] sm:$0xff]
    %v87 = vld [vmem:[#allocation5 + $0x30] sm:$0xff]
    %v88 = vld [vmem:[#allocation5 + $0x38] sm:$0xff]
    %v89 = vld [vmem:[#allocation5 + $0x40] sm:$0xff]
    %v90 = vld [vmem:[#allocation5 + $0x48] sm:$0xff]
    %v91 = vld [vmem:[#allocation5 + $0x50] sm:$0xff]
    %v92 = vld [vmem:[#allocation5 + $0x58] sm:$0xff]
    %v93 = vld [vmem:[#allocation5 + $0x60] sm:$0xf]
    %v94 = vld [vmem:[%s2] sm:$0x1]
    %v96 = vlaneseq
    %v97 = vshrl.u32 %v96, 7
    %v98 = vsub.s32 0, %v97
    %v99 = vrot.slane %v94, %v98
    %vm101 = vcmask 818176
    %v103 = vsel %vm101, %v80, 0
    %vm105 = vcmask 1043456
    %v107 = vsel %vm105, %v93, 0
    %109 = vmatprep.subr.mxu0 0.0
    %v110 = vand.u32 %v81, 4294901760
    %111 = vmatpush1.msra.mxu0 %v110
    %112 = vmatprep.subr.mxu0 0.0
    %v113 = vand.u32 %v82, 4294901760
    %114 = vmatpush1.msra.mxu0 %v113
    %115 = vmatprep.subr.mxu0 0.0
    %v116 = vand.u32 %v83, 4294901760
    %117 = vmatpush1.msra.mxu0 %v116
    %118 = vmatprep.subr.mxu0 0.0
    %v119 = vand.u32 %v84, 4294901760
    %120 = vmatpush1.msra.mxu0 %v119
    %121 = vmatprep.subr.mxu0 0.0
    %v122 = vand.u32 %v85, 4294901760
    %123 = vmatpush1.msra.mxu0 %v122
    %124 = vmatprep.subr.mxu0 0.0
    %v125 = vand.u32 %v86, 4294901760
    %126 = vmatpush1.msra.mxu0 %v125
    %127 = vmatprep.subr.mxu0 0.0
    %v128 = vand.u32 %v87, 4294901760
    %129 = vmatpush1.msra.mxu0 %v128
    %130 = vmatprep.subr.mxu0 0.0
    %v131 = vand.u32 %v88, 4294901760
    %132 = vmatpush1.msra.mxu0 %v131
    %133 = vmatprep.subr.mxu0 0.0
    %v134 = vand.u32 %v89, 4294901760
    %135 = vmatpush1.msra.mxu0 %v134
    %136 = vmatprep.subr.mxu0 0.0
    %v137 = vand.u32 %v90, 4294901760
    %138 = vmatpush1.msra.mxu0 %v137
    %139 = vmatprep.subr.mxu0 0.0
    %v140 = vand.u32 %v91, 4294901760
    %141 = vmatpush1.msra.mxu0 %v140
    %142 = vmatprep.subr.mxu0 0.0
    %v143 = vand.u32 %v92, 4294901760
    %144 = vmatpush1.msra.mxu0 %v143
    %145 = vmatprep.subr.mxu0 0.0
    %v146 = vand.u32 %v107, 4294901760
    %147 = vmatpush1.msra.mxu0 %v146
    %148 = vmatprep.subr.mxu0 0.0
    %149 = vmatpush1.msra.mxu0 0.0
    %150 = vmatprep.subr.mxu0 0.0
    %151 = vmatpush1.msra.mxu0 0.0
    %152 = vmatprep.subr.mxu0 0.0
    %153 = vmatpush1.msra.mxu0 0.0
    %154 = vmatprep.subr.mxu0 0.0
    %155 = vmatpush1.msra.mxu0 0.0
    %156 = vmatprep.subr.mxu0 0.0
    %157 = vmatpush1.msra.mxu0 0.0
    %158 = vmatprep.subr.mxu0 0.0
    %159 = vmatpush1.msra.mxu0 0.0
    %160 = vmatprep.subr.mxu0 0.0
    %161 = vmatpush1.msra.mxu0 0.0
    %162 = vmatprep.subr.mxu0 0.0
    %163 = vmatpush1.msra.mxu0 0.0
    %164 = vmatprep.subr.mxu0 0.0
    %165 = vmatpush1.msra.mxu0 0.0
    %166 = vmatprep.subr.mxu0 0.0
    %167 = vmatpush1.msra.mxu0 0.0
    %168 = vmatprep.subr.mxu0 0.0
    %169 = vmatpush1.msra.mxu0 0.0
    %170 = vmatprep.subr.mxu0 0.0
    %171 = vmatpush1.msra.mxu0 0.0
    %172 = vmatprep.subr.mxu0 0.0
    %173 = vmatpush1.msra.mxu0 0.0
    %174 = vmatprep.subr.mxu0 0.0
    %175 = vmatpush1.msra.mxu0 0.0
    %176 = vmatprep.subr.mxu0 0.0
    %177 = vmatpush1.msra.mxu0 0.0
    %178 = vmatprep.subr.mxu0 0.0
    %179 = vmatpush1.msra.mxu0 0.0
    %180 = vmatprep.subr.mxu0 0.0
    %181 = vmatpush1.msra.mxu0 0.0
    %182 = vmatprep.subr.mxu0 0.0
    %183 = vmatpush1.msra.mxu0 0.0
    %184 = vmatprep.subr.mxu0 0.0
    %185 = vmatpush1.msra.mxu0 0.0
    %186 = vmatprep.mubr.f32.mxu0 0.0
    %v187 = vand.u32 %v103, 4294901760
    %v188 = vsub.f32 %v103, %v187
    %v189 = vand.u32 %v188, 4294901760
    %v190 = vsub.f32 %v188, %v189
    %v191 = vand.u32 %v190, 4294901760
    %192 = vmatmul.mubr.f32.gmra.mrb[0].mxu0 %v191
    %v193 = vpop.f32.mrb[0].mxu0
    %v194 = vadd.f32 %v99, %v193
    %v195 = vpop.f32.mrb[0].mxu0
    %196 = vdwg.mxu0
    %197 = vmatprep.subr.mxu0 0.0
    %v198 = vand.u32 %v81, 4294901760
    %v199 = vsub.f32 %v81, %v198
    %v200 = vand.u32 %v199, 4294901760
    %v201 = vsub.f32 %v199, %v200
    %v202 = vand.u32 %v201, 4294901760
    %203 = vmatpush1.msra.mxu0 %v202
    %204 = vmatprep.subr.mxu0 0.0
    %v205 = vand.u32 %v82, 4294901760
    %v206 = vsub.f32 %v82, %v205
    %v207 = vand.u32 %v206, 4294901760
    %v208 = vsub.f32 %v206, %v207
    %v209 = vand.u32 %v208, 4294901760
    %210 = vmatpush1.msra.mxu0 %v209
    %211 = vmatprep.subr.mxu0 0.0
    %v212 = vand.u32 %v83, 4294901760
    %v213 = vsub.f32 %v83, %v212
    %v214 = vand.u32 %v213, 4294901760
    %v215 = vsub.f32 %v213, %v214
    %v216 = vand.u32 %v215, 4294901760
    %217 = vmatpush1.msra.mxu0 %v216
    %218 = vmatprep.subr.mxu0 0.0
    %v219 = vand.u32 %v84, 4294901760
    %v220 = vsub.f32 %v84, %v219
    %v221 = vand.u32 %v220, 4294901760
    %v222 = vsub.f32 %v220, %v221
    %v223 = vand.u32 %v222, 4294901760
    %224 = vmatpush1.msra.mxu0 %v223
    %225 = vmatprep.subr.mxu0 0.0
    %v226 = vand.u32 %v85, 4294901760
    %v227 = vsub.f32 %v85, %v226
    %v228 = vand.u32 %v227, 4294901760
    %v229 = vsub.f32 %v227, %v228
    %v230 = vand.u32 %v229, 4294901760
    %231 = vmatpush1.msra.mxu0 %v230
    %232 = vmatprep.subr.mxu0 0.0
    %v233 = vand.u32 %v86, 4294901760
    %v234 = vsub.f32 %v86, %v233
    %v235 = vand.u32 %v234, 4294901760
    %v236 = vsub.f32 %v234, %v235
    %v237 = vand.u32 %v236, 4294901760
    %238 = vmatpush1.msra.mxu0 %v237
    %239 = vmatprep.subr.mxu0 0.0
    %v240 = vand.u32 %v87, 4294901760
    %v241 = vsub.f32 %v87, %v240
    %v242 = vand.u32 %v241, 4294901760
    %v243 = vsub.f32 %v241, %v242
    %v244 = vand.u32 %v243, 4294901760
    %245 = vmatpush1.msra.mxu0 %v244
    %246 = vmatprep.subr.mxu0 0.0
    %v247 = vand.u32 %v88, 4294901760
    %v248 = vsub.f32 %v88, %v247
    %v249 = vand.u32 %v248, 4294901760
    %v250 = vsub.f32 %v248, %v249
    %v251 = vand.u32 %v250, 4294901760
    %252 = vmatpush1.msra.mxu0 %v251
    %253 = vmatprep.subr.mxu0 0.0
    %v254 = vand.u32 %v89, 4294901760
    %v255 = vsub.f32 %v89, %v254
    %v256 = vand.u32 %v255, 4294901760
    %v257 = vsub.f32 %v255, %v256
    %v258 = vand.u32 %v257, 4294901760
    %259 = vmatpush1.msra.mxu0 %v258
    %260 = vmatprep.subr.mxu0 0.0
    %v261 = vand.u32 %v90, 4294901760
    %v262 = vsub.f32 %v90, %v261
    %v263 = vand.u32 %v262, 4294901760
    %v264 = vsub.f32 %v262, %v263
    %v265 = vand.u32 %v264, 4294901760
    %266 = vmatpush1.msra.mxu0 %v265
    %267 = vmatprep.subr.mxu0 0.0
    %v268 = vand.u32 %v91, 4294901760
    %v269 = vsub.f32 %v91, %v268
    %v270 = vand.u32 %v269, 4294901760
    %v271 = vsub.f32 %v269, %v270
    %v272 = vand.u32 %v271, 4294901760
    %273 = vmatpush1.msra.mxu0 %v272
    %274 = vmatprep.subr.mxu0 0.0
    %v275 = vand.u32 %v92, 4294901760
    %v276 = vsub.f32 %v92, %v275
    %v277 = vand.u32 %v276, 4294901760
    %v278 = vsub.f32 %v276, %v277
    %v279 = vand.u32 %v278, 4294901760
    %280 = vmatpush1.msra.mxu0 %v279
    %281 = vmatprep.subr.mxu0 0.0
    %v282 = vand.u32 %v107, 4294901760
    %v283 = vsub.f32 %v107, %v282
    %v284 = vand.u32 %v283, 4294901760
    %v285 = vsub.f32 %v283, %v284
    %v286 = vand.u32 %v285, 4294901760
    %287 = vmatpush1.msra.mxu0 %v286
    %288 = vmatprep.subr.mxu0 0.0
    %289 = vmatpush1.msra.mxu0 0.0
    %290 = vmatprep.subr.mxu0 0.0
    %291 = vmatpush1.msra.mxu0 0.0
    %292 = vmatprep.subr.mxu0 0.0
    %293 = vmatpush1.msra.mxu0 0.0
    %294 = vmatprep.subr.mxu0 0.0
    %295 = vmatpush1.msra.mxu0 0.0
    %296 = vmatprep.subr.mxu0 0.0
    %297 = vmatpush1.msra.mxu0 0.0
    %298 = vmatprep.subr.mxu0 0.0
    %299 = vmatpush1.msra.mxu0 0.0
    %300 = vmatprep.subr.mxu0 0.0
    %301 = vmatpush1.msra.mxu0 0.0
    %302 = vmatprep.subr.mxu0 0.0
    %303 = vmatpush1.msra.mxu0 0.0
    %304 = vmatprep.subr.mxu0 0.0
    %305 = vmatpush1.msra.mxu0 0.0
    %306 = vmatprep.subr.mxu0 0.0
    %307 = vmatpush1.msra.mxu0 0.0
    %308 = vmatprep.subr.mxu0 0.0
    %309 = vmatpush1.msra.mxu0 0.0
    %310 = vmatprep.subr.mxu0 0.0
    %311 = vmatpush1.msra.mxu0 0.0
    %312 = vmatprep.subr.mxu0 0.0
    %313 = vmatpush1.msra.mxu0 0.0
    %314 = vmatprep.subr.mxu0 0.0
    %315 = vmatpush1.msra.mxu0 0.0
    %316 = vmatprep.subr.mxu0 0.0
    %317 = vmatpush1.msra.mxu0 0.0
    %318 = vmatprep.subr.mxu0 0.0
    %319 = vmatpush1.msra.mxu0 0.0
    %320 = vmatprep.subr.mxu0 0.0
    %321 = vmatpush1.msra.mxu0 0.0
    %322 = vmatprep.subr.mxu0 0.0
    %323 = vmatpush1.msra.mxu0 0.0
    %324 = vmatprep.subr.mxu0 0.0
    %325 = vmatpush1.msra.mxu0 0.0
    %326 = vmatprep.mubr.f32.mxu0 0.0
    %v327 = vand.u32 %v103, 4294901760
    %328 = vmatmul.mubr.f32.gmra.mrb[0].mxu0 %v327
    %v329 = vpop.f32.mrb[0].mxu0
    %v330 = vadd.f32 %v194, %v329
    %v331 = vpop.f32.mrb[0].mxu0
    %332 = vdwg.mxu0
    %333 = vmatprep.subr.mxu0 0.0
    %v334 = vand.u32 %v81, 4294901760
    %v335 = vsub.f32 %v81, %v334
    %336 = vmatpush1.msra.mxu0 %v335
    %337 = vmatprep.subr.mxu0 0.0
    %v338 = vand.u32 %v82, 4294901760
    %v339 = vsub.f32 %v82, %v338
    %340 = vmatpush1.msra.mxu0 %v339
    %341 = vmatprep.subr.mxu0 0.0
    %v342 = vand.u32 %v83, 4294901760
    %v343 = vsub.f32 %v83, %v342
    %344 = vmatpush1.msra.mxu0 %v343
    %345 = vmatprep.subr.mxu0 0.0
    %v346 = vand.u32 %v84, 4294901760
    %v347 = vsub.f32 %v84, %v346
    %348 = vmatpush1.msra.mxu0 %v347
    %349 = vmatprep.subr.mxu0 0.0
    %v350 = vand.u32 %v85, 4294901760
    %v351 = vsub.f32 %v85, %v350
    %352 = vmatpush1.msra.mxu0 %v351
    %353 = vmatprep.subr.mxu0 0.0
    %v354 = vand.u32 %v86, 4294901760
    %v355 = vsub.f32 %v86, %v354
    %356 = vmatpush1.msra.mxu0 %v355
    %357 = vmatprep.subr.mxu0 0.0
    %v358 = vand.u32 %v87, 4294901760
    %v359 = vsub.f32 %v87, %v358
    %360 = vmatpush1.msra.mxu0 %v359
    %361 = vmatprep.subr.mxu0 0.0
    %v362 = vand.u32 %v88, 4294901760
    %v363 = vsub.f32 %v88, %v362
    %364 = vmatpush1.msra.mxu0 %v363
    %365 = vmatprep.subr.mxu0 0.0
    %v366 = vand.u32 %v89, 4294901760
    %v367 = vsub.f32 %v89, %v366
    %368 = vmatpush1.msra.mxu0 %v367
    %369 = vmatprep.subr.mxu0 0.0
    %v370 = vand.u32 %v90, 4294901760
    %v371 = vsub.f32 %v90, %v370
    %372 = vmatpush1.msra.mxu0 %v371
    %373 = vmatprep.subr.mxu0 0.0
    %v374 = vand.u32 %v91, 4294901760
    %v375 = vsub.f32 %v91, %v374
    %376 = vmatpush1.msra.mxu0 %v375
    %377 = vmatprep.subr.mxu0 0.0
    %v378 = vand.u32 %v92, 4294901760
    %v379 = vsub.f32 %v92, %v378
    %380 = vmatpush1.msra.mxu0 %v379
    %381 = vmatprep.subr.mxu0 0.0
    %v382 = vand.u32 %v107, 4294901760
    %v383 = vsub.f32 %v107, %v382
    %384 = vmatpush1.msra.mxu0 %v383
    %385 = vmatprep.subr.mxu0 0.0
    %386 = vmatpush1.msra.mxu0 0.0
    %387 = vmatprep.subr.mxu0 0.0
    %388 = vmatpush1.msra.mxu0 0.0
    %389 = vmatprep.subr.mxu0 0.0
    %390 = vmatpush1.msra.mxu0 0.0
    %391 = vmatprep.subr.mxu0 0.0
    %392 = vmatpush1.msra.mxu0 0.0
    %393 = vmatprep.subr.mxu0 0.0
    %394 = vmatpush1.msra.mxu0 0.0
    %395 = vmatprep.subr.mxu0 0.0
    %396 = vmatpush1.msra.mxu0 0.0
    %397 = vmatprep.subr.mxu0 0.0
    %398 = vmatpush1.msra.mxu0 0.0
    %399 = vmatprep.subr.mxu0 0.0
    %400 = vmatpush1.msra.mxu0 0.0
    %401 = vmatprep.subr.mxu0 0.0
    %402 = vmatpush1.msra.mxu0 0.0
    %403 = vmatprep.subr.mxu0 0.0
    %404 = vmatpush1.msra.mxu0 0.0
    %405 = vmatprep.subr.mxu0 0.0
    %406 = vmatpush1.msra.mxu0 0.0
    %407 = vmatprep.subr.mxu0 0.0
    %408 = vmatpush1.msra.mxu0 0.0
    %409 = vmatprep.subr.mxu0 0.0
    %410 = vmatpush1.msra.mxu0 0.0
    %411 = vmatprep.subr.mxu0 0.0
    %412 = vmatpush1.msra.mxu0 0.0
    %413 = vmatprep.subr.mxu0 0.0
    %414 = vmatpush1.msra.mxu0 0.0
    %415 = vmatprep.subr.mxu0 0.0
    %416 = vmatpush1.msra.mxu0 0.0
    %417 = vmatprep.subr.mxu0 0.0
    %418 = vmatpush1.msra.mxu0 0.0
    %419 = vmatprep.subr.mxu0 0.0
    %420 = vmatpush1.msra.mxu0 0.0
    %421 = vmatprep.subr.mxu0 0.0
    %422 = vmatpush1.msra.mxu0 0.0
    %423 = vmatprep.mubr.f32.mxu0 0.0
    %v424 = vand.u32 %v103, 4294901760
    %v425 = vsub.f32 %v103, %v424
    %426 = vmatmul.mubr.f32.gmra.mrb[0].mxu0 %v425
    %v427 = vpop.f32.mrb[0].mxu0
    %v428 = vadd.f32 %v330, %v427
    %v429 = vpop.f32.mrb[0].mxu0
    %430 = vdwg.mxu0
    %431 = vmatprep.subr.mxu0 0.0
    %v432 = vand.u32 %v81, 4294901760
    %433 = vmatpush1.msra.mxu0 %v432
    %434 = vmatprep.subr.mxu0 0.0
    %v435 = vand.u32 %v82, 4294901760
    %436 = vmatpush1.msra.mxu0 %v435
    %437 = vmatprep.subr.mxu0 0.0
    %v438 = vand.u32 %v83, 4294901760
    %439 = vmatpush1.msra.mxu0 %v438
    %440 = vmatprep.subr.mxu0 0.0
    %v441 = vand.u32 %v84, 4294901760
    %442 = vmatpush1.msra.mxu0 %v441
    %443 = vmatprep.subr.mxu0 0.0
    %v444 = vand.u32 %v85, 4294901760
    %445 = vmatpush1.msra.mxu0 %v444
    %446 = vmatprep.subr.mxu0 0.0
    %v447 = vand.u32 %v86, 4294901760
    %448 = vmatpush1.msra.mxu0 %v447
    %449 = vmatprep.subr.mxu0 0.0
    %v450 = vand.u32 %v87, 4294901760
    %451 = vmatpush1.msra.mxu0 %v450
    %452 = vmatprep.subr.mxu0 0.0
    %v453 = vand.u32 %v88, 4294901760
    %454 = vmatpush1.msra.mxu0 %v453
    %455 = vmatprep.subr.mxu0 0.0
    %v456 = vand.u32 %v89, 4294901760
    %457 = vmatpush1.msra.mxu0 %v456
    %458 = vmatprep.subr.mxu0 0.0
    %v459 = vand.u32 %v90, 4294901760
    %460 = vmatpush1.msra.mxu0 %v459
    %461 = vmatprep.subr.mxu0 0.0
    %v462 = vand.u32 %v91, 4294901760
    %463 = vmatpush1.msra.mxu0 %v462
    %464 = vmatprep.subr.mxu0 0.0
    %v465 = vand.u32 %v92, 4294901760
    %466 = vmatpush1.msra.mxu0 %v465
    %467 = vmatprep.subr.mxu0 0.0
    %v468 = vand.u32 %v107, 4294901760
    %469 = vmatpush1.msra.mxu0 %v468
    %470 = vmatprep.subr.mxu0 0.0
    %471 = vmatpush1.msra.mxu0 0.0
    %472 = vmatprep.subr.mxu0 0.0
    %473 = vmatpush1.msra.mxu0 0.0
    %474 = vmatprep.subr.mxu0 0.0
    %475 = vmatpush1.msra.mxu0 0.0
    %476 = vmatprep.subr.mxu0 0.0
    %477 = vmatpush1.msra.mxu0 0.0
    %478 = vmatprep.subr.mxu0 0.0
    %479 = vmatpush1.msra.mxu0 0.0
    %480 = vmatprep.subr.mxu0 0.0
    %481 = vmatpush1.msra.mxu0 0.0
    %482 = vmatprep.subr.mxu0 0.0
    %483 = vmatpush1.msra.mxu0 0.0
    %484 = vmatprep.subr.mxu0 0.0
    %485 = vmatpush1.msra.mxu0 0.0
    %486 = vmatprep.subr.mxu0 0.0
    %487 = vmatpush1.msra.mxu0 0.0
    %488 = vmatprep.subr.mxu0 0.0
    %489 = vmatpush1.msra.mxu0 0.0
    %490 = vmatprep.subr.mxu0 0.0
    %491 = vmatpush1.msra.mxu0 0.0
    %492 = vmatprep.subr.mxu0 0.0
    %493 = vmatpush1.msra.mxu0 0.0
    %494 = vmatprep.subr.mxu0 0.0
    %495 = vmatpush1.msra.mxu0 0.0
    %496 = vmatprep.subr.mxu0 0.0
    %497 = vmatpush1.msra.mxu0 0.0
    %498 = vmatprep.subr.mxu0 0.0
    %499 = vmatpush1.msra.mxu0 0.0
    %500 = vmatprep.subr.mxu0 0.0
    %501 = vmatpush1.msra.mxu0 0.0
    %502 = vmatprep.subr.mxu0 0.0
    %503 = vmatpush1.msra.mxu0 0.0
    %504 = vmatprep.subr.mxu0 0.0
    %505 = vmatpush1.msra.mxu0 0.0
    %506 = vmatprep.subr.mxu0 0.0
    %507 = vmatpush1.msra.mxu0 0.0
    %508 = vmatprep.mubr.f32.mxu0 0.0
    %v509 = vand.u32 %v103, 4294901760
    %v510 = vsub.f32 %v103, %v509
    %v511 = vand.u32 %v510, 4294901760
    %512 = vmatmul.mubr.f32.gmra.mrb[0].mxu0 %v511
    %v513 = vpop.f32.mrb[0].mxu0
    %v514 = vadd.f32 %v428, %v513
    %v515 = vpop.f32.mrb[0].mxu0
    %516 = vdwg.mxu0
    %517 = vmatprep.subr.mxu0 0.0
    %v518 = vand.u32 %v81, 4294901760
    %v519 = vsub.f32 %v81, %v518
    %v520 = vand.u32 %v519, 4294901760
    %521 = vmatpush1.msra.mxu0 %v520
    %522 = vmatprep.subr.mxu0 0.0
    %v523 = vand.u32 %v82, 4294901760
    %v524 = vsub.f32 %v82, %v523
    %v525 = vand.u32 %v524, 4294901760
    %526 = vmatpush1.msra.mxu0 %v525
    %527 = vmatprep.subr.mxu0 0.0
    %v528 = vand.u32 %v83, 4294901760
    %v529 = vsub.f32 %v83, %v528
    %v530 = vand.u32 %v529, 4294901760
    %531 = vmatpush1.msra.mxu0 %v530
    %532 = vmatprep.subr.mxu0 0.0
    %v533 = vand.u32 %v84, 4294901760
    %v534 = vsub.f32 %v84, %v533
    %v535 = vand.u32 %v534, 4294901760
    %536 = vmatpush1.msra.mxu0 %v535
    %537 = vmatprep.subr.mxu0 0.0
    %v538 = vand.u32 %v85, 4294901760
    %v539 = vsub.f32 %v85, %v538
    %v540 = vand.u32 %v539, 4294901760
    %541 = vmatpush1.msra.mxu0 %v540
    %542 = vmatprep.subr.mxu0 0.0
    %v543 = vand.u32 %v86, 4294901760
    %v544 = vsub.f32 %v86, %v543
    %v545 = vand.u32 %v544, 4294901760
    %546 = vmatpush1.msra.mxu0 %v545
    %547 = vmatprep.subr.mxu0 0.0
    %v548 = vand.u32 %v87, 4294901760
    %v549 = vsub.f32 %v87, %v548
    %v550 = vand.u32 %v549, 4294901760
    %551 = vmatpush1.msra.mxu0 %v550
    %552 = vmatprep.subr.mxu0 0.0
    %v553 = vand.u32 %v88, 4294901760
    %v554 = vsub.f32 %v88, %v553
    %v555 = vand.u32 %v554, 4294901760
    %556 = vmatpush1.msra.mxu0 %v555
    %557 = vmatprep.subr.mxu0 0.0
    %v558 = vand.u32 %v89, 4294901760
    %v559 = vsub.f32 %v89, %v558
    %v560 = vand.u32 %v559, 4294901760
    %561 = vmatpush1.msra.mxu0 %v560
    %562 = vmatprep.subr.mxu0 0.0
    %v563 = vand.u32 %v90, 4294901760
    %v564 = vsub.f32 %v90, %v563
    %v565 = vand.u32 %v564, 4294901760
    %566 = vmatpush1.msra.mxu0 %v565
    %567 = vmatprep.subr.mxu0 0.0
    %v568 = vand.u32 %v91, 4294901760
    %v569 = vsub.f32 %v91, %v568
    %v570 = vand.u32 %v569, 4294901760
    %571 = vmatpush1.msra.mxu0 %v570
    %572 = vmatprep.subr.mxu0 0.0
    %v573 = vand.u32 %v92, 4294901760
    %v574 = vsub.f32 %v92, %v573
    %v575 = vand.u32 %v574, 4294901760
    %576 = vmatpush1.msra.mxu0 %v575
    %577 = vmatprep.subr.mxu0 0.0
    %v578 = vand.u32 %v107, 4294901760
    %v579 = vsub.f32 %v107, %v578
    %v580 = vand.u32 %v579, 4294901760
    %581 = vmatpush1.msra.mxu0 %v580
    %582 = vmatprep.subr.mxu0 0.0
    %583 = vmatpush1.msra.mxu0 0.0
    %584 = vmatprep.subr.mxu0 0.0
    %585 = vmatpush1.msra.mxu0 0.0
    %586 = vmatprep.subr.mxu0 0.0
    %587 = vmatpush1.msra.mxu0 0.0
    %588 = vmatprep.subr.mxu0 0.0
    %589 = vmatpush1.msra.mxu0 0.0
    %590 = vmatprep.subr.mxu0 0.0
    %591 = vmatpush1.msra.mxu0 0.0
    %592 = vmatprep.subr.mxu0 0.0
    %593 = vmatpush1.msra.mxu0 0.0
    %594 = vmatprep.subr.mxu0 0.0
    %595 = vmatpush1.msra.mxu0 0.0
    %596 = vmatprep.subr.mxu0 0.0
    %597 = vmatpush1.msra.mxu0 0.0
    %598 = vmatprep.subr.mxu0 0.0
    %599 = vmatpush1.msra.mxu0 0.0
    %600 = vmatprep.subr.mxu0 0.0
    %601 = vmatpush1.msra.mxu0 0.0
    %602 = vmatprep.subr.mxu0 0.0
    %603 = vmatpush1.msra.mxu0 0.0
    %604 = vmatprep.subr.mxu0 0.0
    %605 = vmatpush1.msra.mxu0 0.0
    %606 = vmatprep.subr.mxu0 0.0
    %607 = vmatpush1.msra.mxu0 0.0
    %608 = vmatprep.subr.mxu0 0.0
    %609 = vmatpush1.msra.mxu0 0.0
    %610 = vmatprep.subr.mxu0 0.0
    %611 = vmatpush1.msra.mxu0 0.0
    %612 = vmatprep.subr.mxu0 0.0
    %613 = vmatpush1.msra.mxu0 0.0
    %614 = vmatprep.subr.mxu0 0.0
    %615 = vmatpush1.msra.mxu0 0.0
    %616 = vmatprep.subr.mxu0 0.0
    %617 = vmatpush1.msra.mxu0 0.0
    %618 = vmatprep.subr.mxu0 0.0
    %619 = vmatpush1.msra.mxu0 0.0
    %620 = vmatprep.mubr.f32.mxu0 0.0
    %v621 = vand.u32 %v103, 4294901760
    %622 = vmatmul.mubr.f32.gmra.mrb[0].mxu0 %v621
    %v623 = vpop.f32.mrb[0].mxu0
    %v624 = vadd.f32 %v514, %v623
    %v625 = vpop.f32.mrb[0].mxu0
    %626 = vdwg.mxu0
    %627 = vmatprep.subr.mxu0 0.0
    %v628 = vand.u32 %v81, 4294901760
    %629 = vmatpush1.msra.mxu0 %v628
    %630 = vmatprep.subr.mxu0 0.0
    %v631 = vand.u32 %v82, 4294901760
    %632 = vmatpush1.msra.mxu0 %v631
    %633 = vmatprep.subr.mxu0 0.0
    %v634 = vand.u32 %v83, 4294901760
    %635 = vmatpush1.msra.mxu0 %v634
    %636 = vmatprep.subr.mxu0 0.0
    %v637 = vand.u32 %v84, 4294901760
    %638 = vmatpush1.msra.mxu0 %v637
    %639 = vmatprep.subr.mxu0 0.0
    %v640 = vand.u32 %v85, 4294901760
    %641 = vmatpush1.msra.mxu0 %v640
    %642 = vmatprep.subr.mxu0 0.0
    %v643 = vand.u32 %v86, 4294901760
    %644 = vmatpush1.msra.mxu0 %v643
    %645 = vmatprep.subr.mxu0 0.0
    %v646 = vand.u32 %v87, 4294901760
    %647 = vmatpush1.msra.mxu0 %v646
    %648 = vmatprep.subr.mxu0 0.0
    %v649 = vand.u32 %v88, 4294901760
    %650 = vmatpush1.msra.mxu0 %v649
    %651 = vmatprep.subr.mxu0 0.0
    %v652 = vand.u32 %v89, 4294901760
    %653 = vmatpush1.msra.mxu0 %v652
    %654 = vmatprep.subr.mxu0 0.0
    %v655 = vand.u32 %v90, 4294901760
    %656 = vmatpush1.msra.mxu0 %v655
    %657 = vmatprep.subr.mxu0 0.0
    %v658 = vand.u32 %v91, 4294901760
    %659 = vmatpush1.msra.mxu0 %v658
    %660 = vmatprep.subr.mxu0 0.0
    %v661 = vand.u32 %v92, 4294901760
    %662 = vmatpush1.msra.mxu0 %v661
    %663 = vmatprep.subr.mxu0 0.0
    %v664 = vand.u32 %v107, 4294901760
    %665 = vmatpush1.msra.mxu0 %v664
    %666 = vmatprep.subr.mxu0 0.0
    %667 = vmatpush1.msra.mxu0 0.0
    %668 = vmatprep.subr.mxu0 0.0
    %669 = vmatpush1.msra.mxu0 0.0
    %670 = vmatprep.subr.mxu0 0.0
    %671 = vmatpush1.msra.mxu0 0.0
    %672 = vmatprep.subr.mxu0 0.0
    %673 = vmatpush1.msra.mxu0 0.0
    %674 = vmatprep.subr.mxu0 0.0
    %675 = vmatpush1.msra.mxu0 0.0
    %676 = vmatprep.subr.mxu0 0.0
    %677 = vmatpush1.msra.mxu0 0.0
    %678 = vmatprep.subr.mxu0 0.0
    %679 = vmatpush1.msra.mxu0 0.0
    %680 = vmatprep.subr.mxu0 0.0
    %681 = vmatpush1.msra.mxu0 0.0
    %682 = vmatprep.subr.mxu0 0.0
    %683 = vmatpush1.msra.mxu0 0.0
    %684 = vmatprep.subr.mxu0 0.0
    %685 = vmatpush1.msra.mxu0 0.0
    %686 = vmatprep.subr.mxu0 0.0
    %687 = vmatpush1.msra.mxu0 0.0
    %688 = vmatprep.subr.mxu0 0.0
    %689 = vmatpush1.msra.mxu0 0.0
    %690 = vmatprep.subr.mxu0 0.0
    %691 = vmatpush1.msra.mxu0 0.0
    %692 = vmatprep.subr.mxu0 0.0
    %693 = vmatpush1.msra.mxu0 0.0
    %694 = vmatprep.subr.mxu0 0.0
    %695 = vmatpush1.msra.mxu0 0.0
    %696 = vmatprep.subr.mxu0 0.0
    %697 = vmatpush1.msra.mxu0 0.0
    %698 = vmatprep.subr.mxu0 0.0
    %699 = vmatpush1.msra.mxu0 0.0
    %700 = vmatprep.subr.mxu0 0.0
    %701 = vmatpush1.msra.mxu0 0.0
    %702 = vmatprep.subr.mxu0 0.0
    %703 = vmatpush1.msra.mxu0 0.0
    %704 = vmatprep.mubr.f32.mxu0 0.0
    %v705 = vand.u32 %v103, 4294901760
    %706 = vmatmul.mubr.f32.gmra.mrb[0].mxu0 %v705
    %v707 = vpop.f32.mrb[0].mxu0
    %v708 = vadd.f32 %v624, %v707
    %v709 = vpop.f32.mrb[0].mxu0
    %710 = vdwg.mxu0
    %v711 = vmax.f32 %v708, 0.0
    %v712 = vld [vmem:[#allocation7] sm:$0xff]
    %v713 = vld [vmem:[#allocation7 + $0x8] sm:$0xff]
    %v714 = vld [vmem:[#allocation7 + $0x10] sm:$0xff]
    %v715 = vld [vmem:[#allocation7 + $0x18] sm:$0xff]
    %v716 = vld [vmem:[#allocation7 + $0x20] sm:$0xff]
    %v717 = vld [vmem:[#allocation7 + $0x28] sm:$0xff]
    %v718 = vld [vmem:[#allocation7 + $0x30] sm:$0xff]
    %v719 = vld [vmem:[#allocation7 + $0x38] sm:$0xff]
    %v720 = vld [vmem:[#allocation7 + $0x40] sm:$0xff]
    %v721 = vld [vmem:[#allocation7 + $0x48] sm:$0xff]
    %v722 = vld [vmem:[#allocation7 + $0x50] sm:$0xff]
    %v723 = vld [vmem:[#allocation7 + $0x58] sm:$0xff]
    %v724 = vld [vmem:[#allocation7 + $0x60] sm:$0xff]
    %v725 = vld [vmem:[#allocation7 + $0x68] sm:$0xff]
    %v726 = vld [vmem:[#allocation7 + $0x70] sm:$0xff]
    %v727 = vld [vmem:[#allocation7 + $0x78] sm:$0xff]
    %v728 = vld [vmem:[%s4] sm:$0x1]
    %v730 = vlaneseq
    %v731 = vshrl.u32 %v730, 7
    %v732 = vsub.s32 0, %v731
    %v733 = vrot.slane %v728, %v732
    %735 = vmatprep.subr.mxu0 0.0
    %v736 = vand.u32 %v712, 4294901760
    %737 = vmatpush1.msra.mxu0 %v736
    %738 = vmatprep.subr.mxu0 0.0
    %v739 = vand.u32 %v713, 4294901760
    %740 = vmatpush1.msra.mxu0 %v739
    %741 = vmatprep.subr.mxu0 0.0
    %v742 = vand.u32 %v714, 4294901760
    %743 = vmatpush1.msra.mxu0 %v742
    %744 = vmatprep.subr.mxu0 0.0
    %v745 = vand.u32 %v715, 4294901760
    %746 = vmatpush1.msra.mxu0 %v745
    %747 = vmatprep.subr.mxu0 0.0
    %v748 = vand.u32 %v716, 4294901760
    %749 = vmatpush1.msra.mxu0 %v748
    %750 = vmatprep.subr.mxu0 0.0
    %v751 = vand.u32 %v717, 4294901760
    %752 = vmatpush1.msra.mxu0 %v751
    %753 = vmatprep.subr.mxu0 0.0
    %v754 = vand.u32 %v718, 4294901760
    %755 = vmatpush1.msra.mxu0 %v754
    %756 = vmatprep.subr.mxu0 0.0
    %v757 = vand.u32 %v719, 4294901760
    %758 = vmatpush1.msra.mxu0 %v757
    %759 = vmatprep.subr.mxu0 0.0
    %v760 = vand.u32 %v720, 4294901760
    %761 = vmatpush1.msra.mxu0 %v760
    %762 = vmatprep.subr.mxu0 0.0
    %v763 = vand.u32 %v721, 4294901760
    %764 = vmatpush1.msra.mxu0 %v763
    %765 = vmatprep.subr.mxu0 0.0
    %v766 = vand.u32 %v722, 4294901760
    %767 = vmatpush1.msra.mxu0 %v766
    %768 = vmatprep.subr.mxu0 0.0
    %v769 = vand.u32 %v723, 4294901760
    %770 = vmatpush1.msra.mxu0 %v769
    %771 = vmatprep.subr.mxu0 0.0
    %v772 = vand.u32 %v724, 4294901760
    %773 = vmatpush1.msra.mxu0 %v772
    %774 = vmatprep.subr.mxu0 0.0
    %v775 = vand.u32 %v725, 4294901760
    %776 = vmatpush1.msra.mxu0 %v775
    %777 = vmatprep.subr.mxu0 0.0
    %v778 = vand.u32 %v726, 4294901760
    %779 = vmatpush1.msra.mxu0 %v778
    %780 = vmatprep.subr.mxu0 0.0
    %v781 = vand.u32 %v727, 4294901760
    %782 = vmatpush1.msra.mxu0 %v781
    %783 = vmatprep.subr.mxu0 0.0
    %784 = vmatpush1.msra.mxu0 0.0
    %785 = vmatprep.subr.mxu0 0.0
    %786 = vmatpush1.msra.mxu0 0.0
    %787 = vmatprep.subr.mxu0 0.0
    %788 = vmatpush1.msra.mxu0 0.0
    %789 = vmatprep.subr.mxu0 0.0
    %790 = vmatpush1.msra.mxu0 0.0
    %791 = vmatprep.subr.mxu0 0.0
    %792 = vmatpush1.msra.mxu0 0.0
    %793 = vmatprep.subr.mxu0 0.0
    %794 = vmatpush1.msra.mxu0 0.0
    %795 = vmatprep.subr.mxu0 0.0
    %796 = vmatpush1.msra.mxu0 0.0
    %797 = vmatprep.subr.mxu0 0.0
    %798 = vmatpush1.msra.mxu0 0.0
    %799 = vmatprep.subr.mxu0 0.0
    %800 = vmatpush1.msra.mxu0 0.0
    %801 = vmatprep.subr.mxu0 0.0
    %802 = vmatpush1.msra.mxu0 0.0
    %803 = vmatprep.subr.mxu0 0.0
    %804 = vmatpush1.msra.mxu0 0.0
    %805 = vmatprep.subr.mxu0 0.0
    %806 = vmatpush1.msra.mxu0 0.0
    %807 = vmatprep.subr.mxu0 0.0
    %808 = vmatpush1.msra.mxu0 0.0
    %809 = vmatprep.subr.mxu0 0.0
    %810 = vmatpush1.msra.mxu0 0.0
    %811 = vmatprep.subr.mxu0 0.0
    %812 = vmatpush1.msra.mxu0 0.0
    %813 = vmatprep.subr.mxu0 0.0
    %814 = vmatpush1.msra.mxu0 0.0
    %815 = vmatprep.mubr.f32.mxu0 0.0
    %v816 = vand.u32 %v711, 4294901760
    %v817 = vsub.f32 %v711, %v816
    %v818 = vand.u32 %v817, 4294901760
    %v819 = vsub.f32 %v817, %v818
    %v820 = vand.u32 %v819, 4294901760
    %821 = vmatmul.mubr.f32.gmra.mrb[0].mxu0 %v820
    %v822 = vpop.f32.mrb[0].mxu0
    %v823 = vadd.f32 %v733, %v822
    %v824 = vpop.f32.mrb[0].mxu0
    %825 = vdwg.mxu0
    %826 = vmatprep.subr.mxu0 0.0
    %v827 = vand.u32 %v712, 4294901760
    %v828 = vsub.f32 %v712, %v827
    %v829 = vand.u32 %v828, 4294901760
    %v830 = vsub.f32 %v828, %v829
    %v831 = vand.u32 %v830, 4294901760
    %832 = vmatpush1.msra.mxu0 %v831
    %833 = vmatprep.subr.mxu0 0.0
    %v834 = vand.u32 %v713, 4294901760
    %v835 = vsub.f32 %v713, %v834
    %v836 = vand.u32 %v835, 4294901760
    %v837 = vsub.f32 %v835, %v836
    %v838 = vand.u32 %v837, 4294901760
    %839 = vmatpush1.msra.mxu0 %v838
    %840 = vmatprep.subr.mxu0 0.0
    %v841 = vand.u32 %v714, 4294901760
    %v842 = vsub.f32 %v714, %v841
    %v843 = vand.u32 %v842, 4294901760
    %v844 = vsub.f32 %v842, %v843
    %v845 = vand.u32 %v844, 4294901760
    %846 = vmatpush1.msra.mxu0 %v845
    %847 = vmatprep.subr.mxu0 0.0
    %v848 = vand.u32 %v715, 4294901760
    %v849 = vsub.f32 %v715, %v848
    %v850 = vand.u32 %v849, 4294901760
    %v851 = vsub.f32 %v849, %v850
    %v852 = vand.u32 %v851, 4294901760
    %853 = vmatpush1.msra.mxu0 %v852
    %854 = vmatprep.subr.mxu0 0.0
    %v855 = vand.u32 %v716, 4294901760
    %v856 = vsub.f32 %v716, %v855
    %v857 = vand.u32 %v856, 4294901760
    %v858 = vsub.f32 %v856, %v857
    %v859 = vand.u32 %v858, 4294901760
    %860 = vmatpush1.msra.mxu0 %v859
    %861 = vmatprep.subr.mxu0 0.0
    %v862 = vand.u32 %v717, 4294901760
    %v863 = vsub.f32 %v717, %v862
    %v864 = vand.u32 %v863, 4294901760
    %v865 = vsub.f32 %v863, %v864
    %v866 = vand.u32 %v865, 4294901760
    %867 = vmatpush1.msra.mxu0 %v866
    %868 = vmatprep.subr.mxu0 0.0
    %v869 = vand.u32 %v718, 4294901760
    %v870 = vsub.f32 %v718, %v869
    %v871 = vand.u32 %v870, 4294901760
    %v872 = vsub.f32 %v870, %v871
    %v873 = vand.u32 %v872, 4294901760
    %874 = vmatpush1.msra.mxu0 %v873
    %875 = vmatprep.subr.mxu0 0.0
    %v876 = vand.u32 %v719, 4294901760
    %v877 = vsub.f32 %v719, %v876
    %v878 = vand.u32 %v877, 4294901760
    %v879 = vsub.f32 %v877, %v878
    %v880 = vand.u32 %v879, 4294901760
    %881 = vmatpush1.msra.mxu0 %v880
    %882 = vmatprep.subr.mxu0 0.0
    %v883 = vand.u32 %v720, 4294901760
    %v884 = vsub.f32 %v720, %v883
    %v885 = vand.u32 %v884, 4294901760
    %v886 = vsub.f32 %v884, %v885
    %v887 = vand.u32 %v886, 4294901760
    %888 = vmatpush1.msra.mxu0 %v887
    %889 = vmatprep.subr.mxu0 0.0
    %v890 = vand.u32 %v721, 4294901760
    %v891 = vsub.f32 %v721, %v890
    %v892 = vand.u32 %v891, 4294901760
    %v893 = vsub.f32 %v891, %v892
    %v894 = vand.u32 %v893, 4294901760
    %895 = vmatpush1.msra.mxu0 %v894
    %896 = vmatprep.subr.mxu0 0.0
    %v897 = vand.u32 %v722, 4294901760
    %v898 = vsub.f32 %v722, %v897
    %v899 = vand.u32 %v898, 4294901760
    %v900 = vsub.f32 %v898, %v899
    %v901 = vand.u32 %v900, 4294901760
    %902 = vmatpush1.msra.mxu0 %v901
    %903 = vmatprep.subr.mxu0 0.0
    %v904 = vand.u32 %v723, 4294901760
    %v905 = vsub.f32 %v723, %v904
    %v906 = vand.u32 %v905, 4294901760
    %v907 = vsub.f32 %v905, %v906
    %v908 = vand.u32 %v907, 4294901760
    %909 = vmatpush1.msra.mxu0 %v908
    %910 = vmatprep.subr.mxu0 0.0
    %v911 = vand.u32 %v724, 4294901760
    %v912 = vsub.f32 %v724, %v911
    %v913 = vand.u32 %v912, 4294901760
    %v914 = vsub.f32 %v912, %v913
    %v915 = vand.u32 %v914, 4294901760
    %916 = vmatpush1.msra.mxu0 %v915
    %917 = vmatprep.subr.mxu0 0.0
    %v918 = vand.u32 %v725, 4294901760
    %v919 = vsub.f32 %v725, %v918
    %v920 = vand.u32 %v919, 4294901760
    %v921 = vsub.f32 %v919, %v920
    %v922 = vand.u32 %v921, 4294901760
    %923 = vmatpush1.msra.mxu0 %v922
    %924 = vmatprep.subr.mxu0 0.0
    %v925 = vand.u32 %v726, 4294901760
    %v926 = vsub.f32 %v726, %v925
    %v927 = vand.u32 %v926, 4294901760
    %v928 = vsub.f32 %v926, %v927
    %v929 = vand.u32 %v928, 4294901760
    %930 = vmatpush1.msra.mxu0 %v929
    %931 = vmatprep.subr.mxu0 0.0
    %v932 = vand.u32 %v727, 4294901760
    %v933 = vsub.f32 %v727, %v932
    %v934 = vand.u32 %v933, 4294901760
    %v935 = vsub.f32 %v933, %v934
    %v936 = vand.u32 %v935, 4294901760
    %937 = vmatpush1.msra.mxu0 %v936
    %938 = vmatprep.subr.mxu0 0.0
    %939 = vmatpush1.msra.mxu0 0.0
    %940 = vmatprep.subr.mxu0 0.0
    %941 = vmatpush1.msra.mxu0 0.0
    %942 = vmatprep.subr.mxu0 0.0
    %943 = vmatpush1.msra.mxu0 0.0
    %944 = vmatprep.subr.mxu0 0.0
    %945 = vmatpush1.msra.mxu0 0.0
    %946 = vmatprep.subr.mxu0 0.0
    %947 = vmatpush1.msra.mxu0 0.0
    %948 = vmatprep.subr.mxu0 0.0
    %949 = vmatpush1.msra.mxu0 0.0
    %950 = vmatprep.subr.mxu0 0.0
    %951 = vmatpush1.msra.mxu0 0.0
    %952 = vmatprep.subr.mxu0 0.0
    %953 = vmatpush1.msra.mxu0 0.0
    %954 = vmatprep.subr.mxu0 0.0
    %955 = vmatpush1.msra.mxu0 0.0
    %956 = vmatprep.subr.mxu0 0.0
    %957 = vmatpush1.msra.mxu0 0.0
    %958 = vmatprep.subr.mxu0 0.0
    %959 = vmatpush1.msra.mxu0 0.0
    %960 = vmatprep.subr.mxu0 0.0
    %961 = vmatpush1.msra.mxu0 0.0
    %962 = vmatprep.subr.mxu0 0.0
    %963 = vmatpush1.msra.mxu0 0.0
    %964 = vmatprep.subr.mxu0 0.0
    %965 = vmatpush1.msra.mxu0 0.0
    %966 = vmatprep.subr.mxu0 0.0
    %967 = vmatpush1.msra.mxu0 0.0
    %968 = vmatprep.subr.mxu0 0.0
    %969 = vmatpush1.msra.mxu0 0.0
    %970 = vmatprep.mubr.f32.mxu0 0.0
    %v971 = vand.u32 %v711, 4294901760
    %972 = vmatmul.mubr.f32.gmra.mrb[0].mxu0 %v971
    %v973 = vpop.f32.mrb[0].mxu0
    %v974 = vadd.f32 %v823, %v973
    %v975 = vpop.f32.mrb[0].mxu0
    %976 = vdwg.mxu0
    %977 = vmatprep.subr.mxu0 0.0
    %v978 = vand.u32 %v712, 4294901760
    %v979 = vsub.f32 %v712, %v978
    %980 = vmatpush1.msra.mxu0 %v979
    %981 = vmatprep.subr.mxu0 0.0
    %v982 = vand.u32 %v713, 4294901760
    %v983 = vsub.f32 %v713, %v982
    %984 = vmatpush1.msra.mxu0 %v983
    %985 = vmatprep.subr.mxu0 0.0
    %v986 = vand.u32 %v714, 4294901760
    %v987 = vsub.f32 %v714, %v986
    %988 = vmatpush1.msra.mxu0 %v987
    %989 = vmatprep.subr.mxu0 0.0
    %v990 = vand.u32 %v715, 4294901760
    %v991 = vsub.f32 %v715, %v990
    %992 = vmatpush1.msra.mxu0 %v991
    %993 = vmatprep.subr.mxu0 0.0
    %v994 = vand.u32 %v716, 4294901760
    %v995 = vsub.f32 %v716, %v994
    %996 = vmatpush1.msra.mxu0 %v995
    %997 = vmatprep.subr.mxu0 0.0
    %v998 = vand.u32 %v717, 4294901760
    %v999 = vsub.f32 %v717, %v998
    %1000 = vmatpush1.msra.mxu0 %v999
    %1001 = vmatprep.subr.mxu0 0.0
    %v1002 = vand.u32 %v718, 4294901760
    %v1003 = vsub.f32 %v718, %v1002
    %1004 = vmatpush1.msra.mxu0 %v1003
    %1005 = vmatprep.subr.mxu0 0.0
    %v1006 = vand.u32 %v719, 4294901760
    %v1007 = vsub.f32 %v719, %v1006
    %1008 = vmatpush1.msra.mxu0 %v1007
    %1009 = vmatprep.subr.mxu0 0.0
    %v1010 = vand.u32 %v720, 4294901760
    %v1011 = vsub.f32 %v720, %v1010
    %1012 = vmatpush1.msra.mxu0 %v1011
    %1013 = vmatprep.subr.mxu0 0.0
    %v1014 = vand.u32 %v721, 4294901760
    %v1015 = vsub.f32 %v721, %v1014
    %1016 = vmatpush1.msra.mxu0 %v1015
    %1017 = vmatprep.subr.mxu0 0.0
    %v1018 = vand.u32 %v722, 4294901760
    %v1019 = vsub.f32 %v722, %v1018
    %1020 = vmatpush1.msra.mxu0 %v1019
    %1021 = vmatprep.subr.mxu0 0.0
    %v1022 = vand.u32 %v723, 4294901760
    %v1023 = vsub.f32 %v723, %v1022
    %1024 = vmatpush1.msra.mxu0 %v1023
    %1025 = vmatprep.subr.mxu0 0.0
    %v1026 = vand.u32 %v724, 4294901760
    %v1027 = vsub.f32 %v724, %v1026
    %1028 = vmatpush1.msra.mxu0 %v1027
    %1029 = vmatprep.subr.mxu0 0.0
    %v1030 = vand.u32 %v725, 4294901760
    %v1031 = vsub.f32 %v725, %v1030
    %1032 = vmatpush1.msra.mxu0 %v1031
    %1033 = vmatprep.subr.mxu0 0.0
    %v1034 = vand.u32 %v726, 4294901760
    %v1035 = vsub.f32 %v726, %v1034
    %1036 = vmatpush1.msra.mxu0 %v1035
    %1037 = vmatprep.subr.mxu0 0.0
    %v1038 = vand.u32 %v727, 4294901760
    %v1039 = vsub.f32 %v727, %v1038
    %1040 = vmatpush1.msra.mxu0 %v1039
    %1041 = vmatprep.subr.mxu0 0.0
    %1042 = vmatpush1.msra.mxu0 0.0
    %1043 = vmatprep.subr.mxu0 0.0
    %1044 = vmatpush1.msra.mxu0 0.0
    %1045 = vmatprep.subr.mxu0 0.0
    %1046 = vmatpush1.msra.mxu0 0.0
    %1047 = vmatprep.subr.mxu0 0.0
    %1048 = vmatpush1.msra.mxu0 0.0
    %1049 = vmatprep.subr.mxu0 0.0
    %1050 = vmatpush1.msra.mxu0 0.0
    %1051 = vmatprep.subr.mxu0 0.0
    %1052 = vmatpush1.msra.mxu0 0.0
    %1053 = vmatprep.subr.mxu0 0.0
    %1054 = vmatpush1.msra.mxu0 0.0
    %1055 = vmatprep.subr.mxu0 0.0
    %1056 = vmatpush1.msra.mxu0 0.0
    %1057 = vmatprep.subr.mxu0 0.0
    %1058 = vmatpush1.msra.mxu0 0.0
    %1059 = vmatprep.subr.mxu0 0.0
    %1060 = vmatpush1.msra.mxu0 0.0
    %1061 = vmatprep.subr.mxu0 0.0
    %1062 = vmatpush1.msra.mxu0 0.0
    %1063 = vmatprep.subr.mxu0 0.0
    %1064 = vmatpush1.msra.mxu0 0.0
    %1065 = vmatprep.subr.mxu0 0.0
    %1066 = vmatpush1.msra.mxu0 0.0
    %1067 = vmatprep.subr.mxu0 0.0
    %1068 = vmatpush1.msra.mxu0 0.0
    %1069 = vmatprep.subr.mxu0 0.0
    %1070 = vmatpush1.msra.mxu0 0.0
    %1071 = vmatprep.subr.mxu0 0.0
    %1072 = vmatpush1.msra.mxu0 0.0
    %1073 = vmatprep.mubr.f32.mxu0 0.0
    %v1074 = vand.u32 %v711, 4294901760
    %v1075 = vsub.f32 %v711, %v1074
    %1076 = vmatmul.mubr.f32.gmra.mrb[0].mxu0 %v1075
    %v1077 = vpop.f32.mrb[0].mxu0
    %v1078 = vadd.f32 %v974, %v1077
    %v1079 = vpop.f32.mrb[0].mxu0
    %1080 = vdwg.mxu0
    %1081 = vmatprep.subr.mxu0 0.0
    %v1082 = vand.u32 %v712, 4294901760
    %1083 = vmatpush1.msra.mxu0 %v1082
    %1084 = vmatprep.subr.mxu0 0.0
    %v1085 = vand.u32 %v713, 4294901760
    %1086 = vmatpush1.msra.mxu0 %v1085
    %1087 = vmatprep.subr.mxu0 0.0
    %v1088 = vand.u32 %v714, 4294901760
    %1089 = vmatpush1.msra.mxu0 %v1088
    %1090 = vmatprep.subr.mxu0 0.0
    %v1091 = vand.u32 %v715, 4294901760
    %1092 = vmatpush1.msra.mxu0 %v1091
    %1093 = vmatprep.subr.mxu0 0.0
    %v1094 = vand.u32 %v716, 4294901760
    %1095 = vmatpush1.msra.mxu0 %v1094
    %1096 = vmatprep.subr.mxu0 0.0
    %v1097 = vand.u32 %v717, 4294901760
    %1098 = vmatpush1.msra.mxu0 %v1097
    %1099 = vmatprep.subr.mxu0 0.0
    %v1100 = vand.u32 %v718, 4294901760
    %1101 = vmatpush1.msra.mxu0 %v1100
    %1102 = vmatprep.subr.mxu0 0.0
    %v1103 = vand.u32 %v719, 4294901760
    %1104 = vmatpush1.msra.mxu0 %v1103
    %1105 = vmatprep.subr.mxu0 0.0
    %v1106 = vand.u32 %v720, 4294901760
    %1107 = vmatpush1.msra.mxu0 %v1106
    %1108 = vmatprep.subr.mxu0 0.0
    %v1109 = vand.u32 %v721, 4294901760
    %1110 = vmatpush1.msra.mxu0 %v1109
    %1111 = vmatprep.subr.mxu0 0.0
    %v1112 = vand.u32 %v722, 4294901760
    %1113 = vmatpush1.msra.mxu0 %v1112
    %1114 = vmatprep.subr.mxu0 0.0
    %v1115 = vand.u32 %v723, 4294901760
    %1116 = vmatpush1.msra.mxu0 %v1115
    %1117 = vmatprep.subr.mxu0 0.0
    %v1118 = vand.u32 %v724, 4294901760
    %1119 = vmatpush1.msra.mxu0 %v1118
    %1120 = vmatprep.subr.mxu0 0.0
    %v1121 = vand.u32 %v725, 4294901760
    %1122 = vmatpush1.msra.mxu0 %v1121
    %1123 = vmatprep.subr.mxu0 0.0
    %v1124 = vand.u32 %v726, 4294901760
    %1125 = vmatpush1.msra.mxu0 %v1124
    %1126 = vmatprep.subr.mxu0 0.0
    %v1127 = vand.u32 %v727, 4294901760
    %1128 = vmatpush1.msra.mxu0 %v1127
    %1129 = vmatprep.subr.mxu0 0.0
    %1130 = vmatpush1.msra.mxu0 0.0
    %1131 = vmatprep.subr.mxu0 0.0
    %1132 = vmatpush1.msra.mxu0 0.0
    %1133 = vmatprep.subr.mxu0 0.0
    %1134 = vmatpush1.msra.mxu0 0.0
    %1135 = vmatprep.subr.mxu0 0.0
    %1136 = vmatpush1.msra.mxu0 0.0
    %1137 = vmatprep.subr.mxu0 0.0
    %1138 = vmatpush1.msra.mxu0 0.0
    %1139 = vmatprep.subr.mxu0 0.0
    %1140 = vmatpush1.msra.mxu0 0.0
    %1141 = vmatprep.subr.mxu0 0.0
    %1142 = vmatpush1.msra.mxu0 0.0
    %1143 = vmatprep.subr.mxu0 0.0
    %1144 = vmatpush1.msra.mxu0 0.0
    %1145 = vmatprep.subr.mxu0 0.0
    %1146 = vmatpush1.msra.mxu0 0.0
    %1147 = vmatprep.subr.mxu0 0.0
    %1148 = vmatpush1.msra.mxu0 0.0
    %1149 = vmatprep.subr.mxu0 0.0
    %1150 = vmatpush1.msra.mxu0 0.0
    %1151 = vmatprep.subr.mxu0 0.0
    %1152 = vmatpush1.msra.mxu0 0.0
    %1153 = vmatprep.subr.mxu0 0.0
    %1154 = vmatpush1.msra.mxu0 0.0
    %1155 = vmatprep.subr.mxu0 0.0
    %1156 = vmatpush1.msra.mxu0 0.0
    %1157 = vmatprep.subr.mxu0 0.0
    %1158 = vmatpush1.msra.mxu0 0.0
    %1159 = vmatprep.subr.mxu0 0.0
    %1160 = vmatpush1.msra.mxu0 0.0
    %1161 = vmatprep.mubr.f32.mxu0 0.0
    %v1162 = vand.u32 %v711, 4294901760
    %v1163 = vsub.f32 %v711, %v1162
    %v1164 = vand.u32 %v1163, 4294901760
    %1165 = vmatmul.mubr.f32.gmra.mrb[0].mxu0 %v1164
    %v1166 = vpop.f32.mrb[0].mxu0
    %v1167 = vadd.f32 %v1078, %v1166
    %v1168 = vpop.f32.mrb[0].mxu0
    %1169 = vdwg.mxu0
    %1170 = vmatprep.subr.mxu0 0.0
    %v1171 = vand.u32 %v712, 4294901760
    %v1172 = vsub.f32 %v712, %v1171
    %v1173 = vand.u32 %v1172, 4294901760
    %1174 = vmatpush1.msra.mxu0 %v1173
    %1175 = vmatprep.subr.mxu0 0.0
    %v1176 = vand.u32 %v713, 4294901760
    %v1177 = vsub.f32 %v713, %v1176
    %v1178 = vand.u32 %v1177, 4294901760
    %1179 = vmatpush1.msra.mxu0 %v1178
    %1180 = vmatprep.subr.mxu0 0.0
    %v1181 = vand.u32 %v714, 4294901760
    %v1182 = vsub.f32 %v714, %v1181
    %v1183 = vand.u32 %v1182, 4294901760
    %1184 = vmatpush1.msra.mxu0 %v1183
    %1185 = vmatprep.subr.mxu0 0.0
    %v1186 = vand.u32 %v715, 4294901760
    %v1187 = vsub.f32 %v715, %v1186
    %v1188 = vand.u32 %v1187, 4294901760
    %1189 = vmatpush1.msra.mxu0 %v1188
    %1190 = vmatprep.subr.mxu0 0.0
    %v1191 = vand.u32 %v716, 4294901760
    %v1192 = vsub.f32 %v716, %v1191
    %v1193 = vand.u32 %v1192, 4294901760
    %1194 = vmatpush1.msra.mxu0 %v1193
    %1195 = vmatprep.subr.mxu0 0.0
    %v1196 = vand.u32 %v717, 4294901760
    %v1197 = vsub.f32 %v717, %v1196
    %v1198 = vand.u32 %v1197, 4294901760
    %1199 = vmatpush1.msra.mxu0 %v1198
    %1200 = vmatprep.subr.mxu0 0.0
    %v1201 = vand.u32 %v718, 4294901760
    %v1202 = vsub.f32 %v718, %v1201
    %v1203 = vand.u32 %v1202, 4294901760
    %1204 = vmatpush1.msra.mxu0 %v1203
    %1205 = vmatprep.subr.mxu0 0.0
    %v1206 = vand.u32 %v719, 4294901760
    %v1207 = vsub.f32 %v719, %v1206
    %v1208 = vand.u32 %v1207, 4294901760
    %1209 = vmatpush1.msra.mxu0 %v1208
    %1210 = vmatprep.subr.mxu0 0.0
    %v1211 = vand.u32 %v720, 4294901760
    %v1212 = vsub.f32 %v720, %v1211
    %v1213 = vand.u32 %v1212, 4294901760
    %1214 = vmatpush1.msra.mxu0 %v1213
    %1215 = vmatprep.subr.mxu0 0.0
    %v1216 = vand.u32 %v721, 4294901760
    %v1217 = vsub.f32 %v721, %v1216
    %v1218 = vand.u32 %v1217, 4294901760
    %1219 = vmatpush1.msra.mxu0 %v1218
    %1220 = vmatprep.subr.mxu0 0.0
    %v1221 = vand.u32 %v722, 4294901760
    %v1222 = vsub.f32 %v722, %v1221
    %v1223 = vand.u32 %v1222, 4294901760
    %1224 = vmatpush1.msra.mxu0 %v1223
    %1225 = vmatprep.subr.mxu0 0.0
    %v1226 = vand.u32 %v723, 4294901760
    %v1227 = vsub.f32 %v723, %v1226
    %v1228 = vand.u32 %v1227, 4294901760
    %1229 = vmatpush1.msra.mxu0 %v1228
    %1230 = vmatprep.subr.mxu0 0.0
    %v1231 = vand.u32 %v724, 4294901760
    %v1232 = vsub.f32 %v724, %v1231
    %v1233 = vand.u32 %v1232, 4294901760
    %1234 = vmatpush1.msra.mxu0 %v1233
    %1235 = vmatprep.subr.mxu0 0.0
    %v1236 = vand.u32 %v725, 4294901760
    %v1237 = vsub.f32 %v725, %v1236
    %v1238 = vand.u32 %v1237, 4294901760
    %1239 = vmatpush1.msra.mxu0 %v1238
    %1240 = vmatprep.subr.mxu0 0.0
    %v1241 = vand.u32 %v726, 4294901760
    %v1242 = vsub.f32 %v726, %v1241
    %v1243 = vand.u32 %v1242, 4294901760
    %1244 = vmatpush1.msra.mxu0 %v1243
    %1245 = vmatprep.subr.mxu0 0.0
    %v1246 = vand.u32 %v727, 4294901760
    %v1247 = vsub.f32 %v727, %v1246
    %v1248 = vand.u32 %v1247, 4294901760
    %1249 = vmatpush1.msra.mxu0 %v1248
    %1250 = vmatprep.subr.mxu0 0.0
    %1251 = vmatpush1.msra.mxu0 0.0
    %1252 = vmatprep.subr.mxu0 0.0
    %1253 = vmatpush1.msra.mxu0 0.0
    %1254 = vmatprep.subr.mxu0 0.0
    %1255 = vmatpush1.msra.mxu0 0.0
    %1256 = vmatprep.subr.mxu0 0.0
    %1257 = vmatpush1.msra.mxu0 0.0
    %1258 = vmatprep.subr.mxu0 0.0
    %1259 = vmatpush1.msra.mxu0 0.0
    %1260 = vmatprep.subr.mxu0 0.0
    %1261 = vmatpush1.msra.mxu0 0.0
    %1262 = vmatprep.subr.mxu0 0.0
    %1263 = vmatpush1.msra.mxu0 0.0
    %1264 = vmatprep.subr.mxu0 0.0
    %1265 = vmatpush1.msra.mxu0 0.0
    %1266 = vmatprep.subr.mxu0 0.0
    %1267 = vmatpush1.msra.mxu0 0.0
    %1268 = vmatprep.subr.mxu0 0.0
    %1269 = vmatpush1.msra.mxu0 0.0
    %1270 = vmatprep.subr.mxu0 0.0
    %1271 = vmatpush1.msra.mxu0 0.0
    %1272 = vmatprep.subr.mxu0 0.0
    %1273 = vmatpush1.msra.mxu0 0.0
    %1274 = vmatprep.subr.mxu0 0.0
    %1275 = vmatpush1.msra.mxu0 0.0
    %1276 = vmatprep.subr.mxu0 0.0
    %1277 = vmatpush1.msra.mxu0 0.0
    %1278 = vmatprep.subr.mxu0 0.0
    %1279 = vmatpush1.msra.mxu0 0.0
    %1280 = vmatprep.subr.mxu0 0.0
    %1281 = vmatpush1.msra.mxu0 0.0
    %1282 = vmatprep.mubr.f32.mxu0 0.0
    %v1283 = vand.u32 %v711, 4294901760
    %1284 = vmatmul.mubr.f32.gmra.mrb[0].mxu0 %v1283
    %v1285 = vpop.f32.mrb[0].mxu0
    %v1286 = vadd.f32 %v1167, %v1285
    %v1287 = vpop.f32.mrb[0].mxu0
    %1288 = vdwg.mxu0
    %1289 = vmatprep.subr.mxu0 0.0
    %v1290 = vand.u32 %v712, 4294901760
    %1291 = vmatpush1.msra.mxu0 %v1290
    %1292 = vmatprep.subr.mxu0 0.0
    %v1293 = vand.u32 %v713, 4294901760
    %1294 = vmatpush1.msra.mxu0 %v1293
    %1295 = vmatprep.subr.mxu0 0.0
    %v1296 = vand.u32 %v714, 4294901760
    %1297 = vmatpush1.msra.mxu0 %v1296
    %1298 = vmatprep.subr.mxu0 0.0
    %v1299 = vand.u32 %v715, 4294901760
    %1300 = vmatpush1.msra.mxu0 %v1299
    %1301 = vmatprep.subr.mxu0 0.0
    %v1302 = vand.u32 %v716, 4294901760
    %1303 = vmatpush1.msra.mxu0 %v1302
    %1304 = vmatprep.subr.mxu0 0.0
    %v1305 = vand.u32 %v717, 4294901760
    %1306 = vmatpush1.msra.mxu0 %v1305
    %1307 = vmatprep.subr.mxu0 0.0
    %v1308 = vand.u32 %v718, 4294901760
    %1309 = vmatpush1.msra.mxu0 %v1308
    %1310 = vmatprep.subr.mxu0 0.0
    %v1311 = vand.u32 %v719, 4294901760
    %1312 = vmatpush1.msra.mxu0 %v1311
    %1313 = vmatprep.subr.mxu0 0.0
    %v1314 = vand.u32 %v720, 4294901760
    %1315 = vmatpush1.msra.mxu0 %v1314
    %1316 = vmatprep.subr.mxu0 0.0
    %v1317 = vand.u32 %v721, 4294901760
    %1318 = vmatpush1.msra.mxu0 %v1317
    %1319 = vmatprep.subr.mxu0 0.0
    %v1320 = vand.u32 %v722, 4294901760
    %1321 = vmatpush1.msra.mxu0 %v1320
    %1322 = vmatprep.subr.mxu0 0.0
    %v1323 = vand.u32 %v723, 4294901760
    %1324 = vmatpush1.msra.mxu0 %v1323
    %1325 = vmatprep.subr.mxu0 0.0
    %v1326 = vand.u32 %v724, 4294901760
    %1327 = vmatpush1.msra.mxu0 %v1326
    %1328 = vmatprep.subr.mxu0 0.0
    %v1329 = vand.u32 %v725, 4294901760
    %1330 = vmatpush1.msra.mxu0 %v1329
    %1331 = vmatprep.subr.mxu0 0.0
    %v1332 = vand.u32 %v726, 4294901760
    %1333 = vmatpush1.msra.mxu0 %v1332
    %1334 = vmatprep.subr.mxu0 0.0
    %v1335 = vand.u32 %v727, 4294901760
    %1336 = vmatpush1.msra.mxu0 %v1335
    %1337 = vmatprep.subr.mxu0 0.0
    %1338 = vmatpush1.msra.mxu0 0.0
    %1339 = vmatprep.subr.mxu0 0.0
    %1340 = vmatpush1.msra.mxu0 0.0
    %1341 = vmatprep.subr.mxu0 0.0
    %1342 = vmatpush1.msra.mxu0 0.0
    %1343 = vmatprep.subr.mxu0 0.0
    %1344 = vmatpush1.msra.mxu0 0.0
    %1345 = vmatprep.subr.mxu0 0.0
    %1346 = vmatpush1.msra.mxu0 0.0
    %1347 = vmatprep.subr.mxu0 0.0
    %1348 = vmatpush1.msra.mxu0 0.0
    %1349 = vmatprep.subr.mxu0 0.0
    %1350 = vmatpush1.msra.mxu0 0.0
    %1351 = vmatprep.subr.mxu0 0.0
    %1352 = vmatpush1.msra.mxu0 0.0
    %1353 = vmatprep.subr.mxu0 0.0
    %1354 = vmatpush1.msra.mxu0 0.0
    %1355 = vmatprep.subr.mxu0 0.0
    %1356 = vmatpush1.msra.mxu0 0.0
    %1357 = vmatprep.subr.mxu0 0.0
    %1358 = vmatpush1.msra.mxu0 0.0
    %1359 = vmatprep.subr.mxu0 0.0
    %1360 = vmatpush1.msra.mxu0 0.0
    %1361 = vmatprep.subr.mxu0 0.0
    %1362 = vmatpush1.msra.mxu0 0.0
    %1363 = vmatprep.subr.mxu0 0.0
    %1364 = vmatpush1.msra.mxu0 0.0
    %1365 = vmatprep.subr.mxu0 0.0
    %1366 = vmatpush1.msra.mxu0 0.0
    %1367 = vmatprep.subr.mxu0 0.0
    %1368 = vmatpush1.msra.mxu0 0.0
    %1369 = vmatprep.mubr.f32.mxu0 0.0
    %v1370 = vand.u32 %v711, 4294901760
    %1371 = vmatmul.mubr.f32.gmra.mrb[0].mxu0 %v1370
    %v1372 = vpop.f32.mrb[0].mxu0
    %v1373 = vadd.f32 %v1286, %v1372
    %v1374 = vpop.f32.mrb[0].mxu0
    %1375 = vdwg.mxu0
    %v1376 = vmax.f32 %v1373, 0.0
    %v1377 = vld [vmem:[#allocation8] sm:$0xff]
    %v1378 = vld [vmem:[#allocation8 + $0x8] sm:$0xff]
    %v1379 = vld [vmem:[#allocation8 + $0x10] sm:$0xff]
    %v1380 = vld [vmem:[#allocation8 + $0x18] sm:$0xff]
    %v1381 = vld [vmem:[#allocation8 + $0x20] sm:$0xff]
    %v1382 = vld [vmem:[#allocation8 + $0x28] sm:$0xff]
    %v1383 = vld [vmem:[#allocation8 + $0x30] sm:$0xff]
    %v1384 = vld [vmem:[#allocation8 + $0x38] sm:$0xff]
    %v1385 = vld [vmem:[#allocation8 + $0x40] sm:$0xff]
    %v1386 = vld [vmem:[#allocation8 + $0x48] sm:$0xff]
    %v1387 = vld [vmem:[#allocation8 + $0x50] sm:$0xff]
    %v1388 = vld [vmem:[#allocation8 + $0x58] sm:$0xff]
    %v1389 = vld [vmem:[#allocation8 + $0x60] sm:$0xff]
    %v1390 = vld [vmem:[#allocation8 + $0x68] sm:$0xff]
    %v1391 = vld [vmem:[#allocation8 + $0x70] sm:$0xff]
    %v1392 = vld [vmem:[#allocation8 + $0x78] sm:$0xff]
    %v1393 = vld [vmem:[%s6] sm:$0x1]
    %v1395 = vlaneseq
    %v1396 = vshrl.u32 %v1395, 7
    %v1397 = vsub.s32 0, %v1396
    %v1398 = vrot.slane %v1393, %v1397
    %1400 = vmatprep.subr.mxu0 0.0
    %v1401 = vand.u32 %v1377, 4294901760
    %1402 = vmatpush1.msra.mxu0 %v1401
    %1403 = vmatprep.subr.mxu0 0.0
    %v1404 = vand.u32 %v1378, 4294901760
    %1405 = vmatpush1.msra.mxu0 %v1404
    %1406 = vmatprep.subr.mxu0 0.0
    %v1407 = vand.u32 %v1379, 4294901760
    %1408 = vmatpush1.msra.mxu0 %v1407
    %1409 = vmatprep.subr.mxu0 0.0
    %v1410 = vand.u32 %v1380, 4294901760
    %1411 = vmatpush1.msra.mxu0 %v1410
    %1412 = vmatprep.subr.mxu0 0.0
    %v1413 = vand.u32 %v1381, 4294901760
    %1414 = vmatpush1.msra.mxu0 %v1413
    %1415 = vmatprep.subr.mxu0 0.0
    %v1416 = vand.u32 %v1382, 4294901760
    %1417 = vmatpush1.msra.mxu0 %v1416
    %1418 = vmatprep.subr.mxu0 0.0
    %v1419 = vand.u32 %v1383, 4294901760
    %1420 = vmatpush1.msra.mxu0 %v1419
    %1421 = vmatprep.subr.mxu0 0.0
    %v1422 = vand.u32 %v1384, 4294901760
    %1423 = vmatpush1.msra.mxu0 %v1422
    %1424 = vmatprep.subr.mxu0 0.0
    %v1425 = vand.u32 %v1385, 4294901760
    %1426 = vmatpush1.msra.mxu0 %v1425
    %1427 = vmatprep.subr.mxu0 0.0
    %v1428 = vand.u32 %v1386, 4294901760
    %1429 = vmatpush1.msra.mxu0 %v1428
    %1430 = vmatprep.subr.mxu0 0.0
    %v1431 = vand.u32 %v1387, 4294901760
    %1432 = vmatpush1.msra.mxu0 %v1431
    %1433 = vmatprep.subr.mxu0 0.0
    %v1434 = vand.u32 %v1388, 4294901760
    %1435 = vmatpush1.msra.mxu0 %v1434
    %1436 = vmatprep.subr.mxu0 0.0
    %v1437 = vand.u32 %v1389, 4294901760
    %1438 = vmatpush1.msra.mxu0 %v1437
    %1439 = vmatprep.subr.mxu0 0.0
    %v1440 = vand.u32 %v1390, 4294901760
    %1441 = vmatpush1.msra.mxu0 %v1440
    %1442 = vmatprep.subr.mxu0 0.0
    %v1443 = vand.u32 %v1391, 4294901760
    %1444 = vmatpush1.msra.mxu0 %v1443
    %1445 = vmatprep.subr.mxu0 0.0
    %v1446 = vand.u32 %v1392, 4294901760
    %1447 = vmatpush1.msra.mxu0 %v1446
    %1448 = vmatprep.subr.mxu0 0.0
    %1449 = vmatpush1.msra.mxu0 0.0
    %1450 = vmatprep.subr.mxu0 0.0
    %1451 = vmatpush1.msra.mxu0 0.0
    %1452 = vmatprep.subr.mxu0 0.0
    %1453 = vmatpush1.msra.mxu0 0.0
    %1454 = vmatprep.subr.mxu0 0.0
    %1455 = vmatpush1.msra.mxu0 0.0
    %1456 = vmatprep.subr.mxu0 0.0
    %1457 = vmatpush1.msra.mxu0 0.0
    %1458 = vmatprep.subr.mxu0 0.0
    %1459 = vmatpush1.msra.mxu0 0.0
    %1460 = vmatprep.subr.mxu0 0.0
    %1461 = vmatpush1.msra.mxu0 0.0
    %1462 = vmatprep.subr.mxu0 0.0
    %1463 = vmatpush1.msra.mxu0 0.0
    %1464 = vmatprep.subr.mxu0 0.0
    %1465 = vmatpush1.msra.mxu0 0.0
    %1466 = vmatprep.subr.mxu0 0.0
    %1467 = vmatpush1.msra.mxu0 0.0
    %1468 = vmatprep.subr.mxu0 0.0
    %1469 = vmatpush1.msra.mxu0 0.0
    %1470 = vmatprep.subr.mxu0 0.0
    %1471 = vmatpush1.msra.mxu0 0.0
    %1472 = vmatprep.subr.mxu0 0.0
    %1473 = vmatpush1.msra.mxu0 0.0
    %1474 = vmatprep.subr.mxu0 0.0
    %1475 = vmatpush1.msra.mxu0 0.0
    %1476 = vmatprep.subr.mxu0 0.0
    %1477 = vmatpush1.msra.mxu0 0.0
    %1478 = vmatprep.subr.mxu0 0.0
    %1479 = vmatpush1.msra.mxu0 0.0
    %1480 = vmatprep.mubr.f32.mxu0 0.0
    %v1481 = vand.u32 %v1376, 4294901760
    %v1482 = vsub.f32 %v1376, %v1481
    %v1483 = vand.u32 %v1482, 4294901760
    %v1484 = vsub.f32 %v1482, %v1483
    %v1485 = vand.u32 %v1484, 4294901760
    %1486 = vmatmul.mubr.f32.gmra.mrb[0].mxu0 %v1485
    %v1487 = vpop.f32.mrb[0].mxu0
    %v1488 = vadd.f32 %v1398, %v1487
    %v1489 = vpop.f32.mrb[0].mxu0
    %1490 = vdwg.mxu0
    %1491 = vmatprep.subr.mxu0 0.0
    %v1492 = vand.u32 %v1377, 4294901760
    %v1493 = vsub.f32 %v1377, %v1492
    %v1494 = vand.u32 %v1493, 4294901760
    %v1495 = vsub.f32 %v1493, %v1494
    %v1496 = vand.u32 %v1495, 4294901760
    %1497 = vmatpush1.msra.mxu0 %v1496
    %1498 = vmatprep.subr.mxu0 0.0
    %v1499 = vand.u32 %v1378, 4294901760
    %v1500 = vsub.f32 %v1378, %v1499
    %v1501 = vand.u32 %v1500, 4294901760
    %v1502 = vsub.f32 %v1500, %v1501
    %v1503 = vand.u32 %v1502, 4294901760
    %1504 = vmatpush1.msra.mxu0 %v1503
    %1505 = vmatprep.subr.mxu0 0.0
    %v1506 = vand.u32 %v1379, 4294901760
    %v1507 = vsub.f32 %v1379, %v1506
    %v1508 = vand.u32 %v1507, 4294901760
    %v1509 = vsub.f32 %v1507, %v1508
    %v1510 = vand.u32 %v1509, 4294901760
    %1511 = vmatpush1.msra.mxu0 %v1510
    %1512 = vmatprep.subr.mxu0 0.0
    %v1513 = vand.u32 %v1380, 4294901760
    %v1514 = vsub.f32 %v1380, %v1513
    %v1515 = vand.u32 %v1514, 4294901760
    %v1516 = vsub.f32 %v1514, %v1515
    %v1517 = vand.u32 %v1516, 4294901760
    %1518 = vmatpush1.msra.mxu0 %v1517
    %1519 = vmatprep.subr.mxu0 0.0
    %v1520 = vand.u32 %v1381, 4294901760
    %v1521 = vsub.f32 %v1381, %v1520
    %v1522 = vand.u32 %v1521, 4294901760
    %v1523 = vsub.f32 %v1521, %v1522
    %v1524 = vand.u32 %v1523, 4294901760
    %1525 = vmatpush1.msra.mxu0 %v1524
    %1526 = vmatprep.subr.mxu0 0.0
    %v1527 = vand.u32 %v1382, 4294901760
    %v1528 = vsub.f32 %v1382, %v1527
    %v1529 = vand.u32 %v1528, 4294901760
    %v1530 = vsub.f32 %v1528, %v1529
    %v1531 = vand.u32 %v1530, 4294901760
    %1532 = vmatpush1.msra.mxu0 %v1531
    %1533 = vmatprep.subr.mxu0 0.0
    %v1534 = vand.u32 %v1383, 4294901760
    %v1535 = vsub.f32 %v1383, %v1534
    %v1536 = vand.u32 %v1535, 4294901760
    %v1537 = vsub.f32 %v1535, %v1536
    %v1538 = vand.u32 %v1537, 4294901760
    %1539 = vmatpush1.msra.mxu0 %v1538
    %1540 = vmatprep.subr.mxu0 0.0
    %v1541 = vand.u32 %v1384, 4294901760
    %v1542 = vsub.f32 %v1384, %v1541
    %v1543 = vand.u32 %v1542, 4294901760
    %v1544 = vsub.f32 %v1542, %v1543
    %v1545 = vand.u32 %v1544, 4294901760
    %1546 = vmatpush1.msra.mxu0 %v1545
    %1547 = vmatprep.subr.mxu0 0.0
    %v1548 = vand.u32 %v1385, 4294901760
    %v1549 = vsub.f32 %v1385, %v1548
    %v1550 = vand.u32 %v1549, 4294901760
    %v1551 = vsub.f32 %v1549, %v1550
    %v1552 = vand.u32 %v1551, 4294901760
    %1553 = vmatpush1.msra.mxu0 %v1552
    %1554 = vmatprep.subr.mxu0 0.0
    %v1555 = vand.u32 %v1386, 4294901760
    %v1556 = vsub.f32 %v1386, %v1555
    %v1557 = vand.u32 %v1556, 4294901760
    %v1558 = vsub.f32 %v1556, %v1557
    %v1559 = vand.u32 %v1558, 4294901760
    %1560 = vmatpush1.msra.mxu0 %v1559
    %1561 = vmatprep.subr.mxu0 0.0
    %v1562 = vand.u32 %v1387, 4294901760
    %v1563 = vsub.f32 %v1387, %v1562
    %v1564 = vand.u32 %v1563, 4294901760
    %v1565 = vsub.f32 %v1563, %v1564
    %v1566 = vand.u32 %v1565, 4294901760
    %1567 = vmatpush1.msra.mxu0 %v1566
    %1568 = vmatprep.subr.mxu0 0.0
    %v1569 = vand.u32 %v1388, 4294901760
    %v1570 = vsub.f32 %v1388, %v1569
    %v1571 = vand.u32 %v1570, 4294901760
    %v1572 = vsub.f32 %v1570, %v1571
    %v1573 = vand.u32 %v1572, 4294901760
    %1574 = vmatpush1.msra.mxu0 %v1573
    %1575 = vmatprep.subr.mxu0 0.0
    %v1576 = vand.u32 %v1389, 4294901760
    %v1577 = vsub.f32 %v1389, %v1576
    %v1578 = vand.u32 %v1577, 4294901760
    %v1579 = vsub.f32 %v1577, %v1578
    %v1580 = vand.u32 %v1579, 4294901760
    %1581 = vmatpush1.msra.mxu0 %v1580
    %1582 = vmatprep.subr.mxu0 0.0
    %v1583 = vand.u32 %v1390, 4294901760
    %v1584 = vsub.f32 %v1390, %v1583
    %v1585 = vand.u32 %v1584, 4294901760
    %v1586 = vsub.f32 %v1584, %v1585
    %v1587 = vand.u32 %v1586, 4294901760
    %1588 = vmatpush1.msra.mxu0 %v1587
    %1589 = vmatprep.subr.mxu0 0.0
    %v1590 = vand.u32 %v1391, 4294901760
    %v1591 = vsub.f32 %v1391, %v1590
    %v1592 = vand.u32 %v1591, 4294901760
    %v1593 = vsub.f32 %v1591, %v1592
    %v1594 = vand.u32 %v1593, 4294901760
    %1595 = vmatpush1.msra.mxu0 %v1594
    %1596 = vmatprep.subr.mxu0 0.0
    %v1597 = vand.u32 %v1392, 4294901760
    %v1598 = vsub.f32 %v1392, %v1597
    %v1599 = vand.u32 %v1598, 4294901760
    %v1600 = vsub.f32 %v1598, %v1599
    %v1601 = vand.u32 %v1600, 4294901760
    %1602 = vmatpush1.msra.mxu0 %v1601
    %1603 = vmatprep.subr.mxu0 0.0
    %1604 = vmatpush1.msra.mxu0 0.0
    %1605 = vmatprep.subr.mxu0 0.0
    %1606 = vmatpush1.msra.mxu0 0.0
    %1607 = vmatprep.subr.mxu0 0.0
    %1608 = vmatpush1.msra.mxu0 0.0
    %1609 = vmatprep.subr.mxu0 0.0
    %1610 = vmatpush1.msra.mxu0 0.0
    %1611 = vmatprep.subr.mxu0 0.0
    %1612 = vmatpush1.msra.mxu0 0.0
    %1613 = vmatprep.subr.mxu0 0.0
    %1614 = vmatpush1.msra.mxu0 0.0
    %1615 = vmatprep.subr.mxu0 0.0
    %1616 = vmatpush1.msra.mxu0 0.0
    %1617 = vmatprep.subr.mxu0 0.0
    %1618 = vmatpush1.msra.mxu0 0.0
    %1619 = vmatprep.subr.mxu0 0.0
    %1620 = vmatpush1.msra.mxu0 0.0
    %1621 = vmatprep.subr.mxu0 0.0
    %1622 = vmatpush1.msra.mxu0 0.0
    %1623 = vmatprep.subr.mxu0 0.0
    %1624 = vmatpush1.msra.mxu0 0.0
    %1625 = vmatprep.subr.mxu0 0.0
    %1626 = vmatpush1.msra.mxu0 0.0
    %1627 = vmatprep.subr.mxu0 0.0
    %1628 = vmatpush1.msra.mxu0 0.0
    %1629 = vmatprep.subr.mxu0 0.0
    %1630 = vmatpush1.msra.mxu0 0.0
    %1631 = vmatprep.subr.mxu0 0.0
    %1632 = vmatpush1.msra.mxu0 0.0
    %1633 = vmatprep.subr.mxu0 0.0
    %1634 = vmatpush1.msra.mxu0 0.0
    %1635 = vmatprep.mubr.f32.mxu0 0.0
    %v1636 = vand.u32 %v1376, 4294901760
    %1637 = vmatmul.mubr.f32.gmra.mrb[0].mxu0 %v1636
    %v1638 = vpop.f32.mrb[0].mxu0
    %v1639 = vadd.f32 %v1488, %v1638
    %v1640 = vpop.f32.mrb[0].mxu0
    %1641 = vdwg.mxu0
    %1642 = vmatprep.subr.mxu0 0.0
    %v1643 = vand.u32 %v1377, 4294901760
    %v1644 = vsub.f32 %v1377, %v1643
    %1645 = vmatpush1.msra.mxu0 %v1644
    %1646 = vmatprep.subr.mxu0 0.0
    %v1647 = vand.u32 %v1378, 4294901760
    %v1648 = vsub.f32 %v1378, %v1647
    %1649 = vmatpush1.msra.mxu0 %v1648
    %1650 = vmatprep.subr.mxu0 0.0
    %v1651 = vand.u32 %v1379, 4294901760
    %v1652 = vsub.f32 %v1379, %v1651
    %1653 = vmatpush1.msra.mxu0 %v1652
    %1654 = vmatprep.subr.mxu0 0.0
    %v1655 = vand.u32 %v1380, 4294901760
    %v1656 = vsub.f32 %v1380, %v1655
    %1657 = vmatpush1.msra.mxu0 %v1656
    %1658 = vmatprep.subr.mxu0 0.0
    %v1659 = vand.u32 %v1381, 4294901760
    %v1660 = vsub.f32 %v1381, %v1659
    %1661 = vmatpush1.msra.mxu0 %v1660
    %1662 = vmatprep.subr.mxu0 0.0
    %v1663 = vand.u32 %v1382, 4294901760
    %v1664 = vsub.f32 %v1382, %v1663
    %1665 = vmatpush1.msra.mxu0 %v1664
    %1666 = vmatprep.subr.mxu0 0.0
    %v1667 = vand.u32 %v1383, 4294901760
    %v1668 = vsub.f32 %v1383, %v1667
    %1669 = vmatpush1.msra.mxu0 %v1668
    %1670 = vmatprep.subr.mxu0 0.0
    %v1671 = vand.u32 %v1384, 4294901760
    %v1672 = vsub.f32 %v1384, %v1671
    %1673 = vmatpush1.msra.mxu0 %v1672
    %1674 = vmatprep.subr.mxu0 0.0
    %v1675 = vand.u32 %v1385, 4294901760
    %v1676 = vsub.f32 %v1385, %v1675
    %1677 = vmatpush1.msra.mxu0 %v1676
    %1678 = vmatprep.subr.mxu0 0.0
    %v1679 = vand.u32 %v1386, 4294901760
    %v1680 = vsub.f32 %v1386, %v1679
    %1681 = vmatpush1.msra.mxu0 %v1680
    %1682 = vmatprep.subr.mxu0 0.0
    %v1683 = vand.u32 %v1387, 4294901760
    %v1684 = vsub.f32 %v1387, %v1683
    %1685 = vmatpush1.msra.mxu0 %v1684
    %1686 = vmatprep.subr.mxu0 0.0
    %v1687 = vand.u32 %v1388, 4294901760
    %v1688 = vsub.f32 %v1388, %v1687
    %1689 = vmatpush1.msra.mxu0 %v1688
    %1690 = vmatprep.subr.mxu0 0.0
    %v1691 = vand.u32 %v1389, 4294901760
    %v1692 = vsub.f32 %v1389, %v1691
    %1693 = vmatpush1.msra.mxu0 %v1692
    %1694 = vmatprep.subr.mxu0 0.0
    %v1695 = vand.u32 %v1390, 4294901760
    %v1696 = vsub.f32 %v1390, %v1695
    %1697 = vmatpush1.msra.mxu0 %v1696
    %1698 = vmatprep.subr.mxu0 0.0
    %v1699 = vand.u32 %v1391, 4294901760
    %v1700 = vsub.f32 %v1391, %v1699
    %1701 = vmatpush1.msra.mxu0 %v1700
    %1702 = vmatprep.subr.mxu0 0.0
    %v1703 = vand.u32 %v1392, 4294901760
    %v1704 = vsub.f32 %v1392, %v1703
    %1705 = vmatpush1.msra.mxu0 %v1704
    %1706 = vmatprep.subr.mxu0 0.0
    %1707 = vmatpush1.msra.mxu0 0.0
    %1708 = vmatprep.subr.mxu0 0.0
    %1709 = vmatpush1.msra.mxu0 0.0
    %1710 = vmatprep.subr.mxu0 0.0
    %1711 = vmatpush1.msra.mxu0 0.0
    %1712 = vmatprep.subr.mxu0 0.0
    %1713 = vmatpush1.msra.mxu0 0.0
    %1714 = vmatprep.subr.mxu0 0.0
    %1715 = vmatpush1.msra.mxu0 0.0
    %1716 = vmatprep.subr.mxu0 0.0
    %1717 = vmatpush1.msra.mxu0 0.0
    %1718 = vmatprep.subr.mxu0 0.0
    %1719 = vmatpush1.msra.mxu0 0.0
    %1720 = vmatprep.subr.mxu0 0.0
    %1721 = vmatpush1.msra.mxu0 0.0
    %1722 = vmatprep.subr.mxu0 0.0
    %1723 = vmatpush1.msra.mxu0 0.0
    %1724 = vmatprep.subr.mxu0 0.0
    %1725 = vmatpush1.msra.mxu0 0.0
    %1726 = vmatprep.subr.mxu0 0.0
    %1727 = vmatpush1.msra.mxu0 0.0
    %1728 = vmatprep.subr.mxu0 0.0
    %1729 = vmatpush1.msra.mxu0 0.0
    %1730 = vmatprep.subr.mxu0 0.0
    %1731 = vmatpush1.msra.mxu0 0.0
    %1732 = vmatprep.subr.mxu0 0.0
    %1733 = vmatpush1.msra.mxu0 0.0
    %1734 = vmatprep.subr.mxu0 0.0
    %1735 = vmatpush1.msra.mxu0 0.0
    %1736 = vmatprep.subr.mxu0 0.0
    %1737 = vmatpush1.msra.mxu0 0.0
    %1738 = vmatprep.mubr.f32.mxu0 0.0
    %v1739 = vand.u32 %v1376, 4294901760
    %v1740 = vsub.f32 %v1376, %v1739
    %1741 = vmatmul.mubr.f32.gmra.mrb[0].mxu0 %v1740
    %v1742 = vpop.f32.mrb[0].mxu0
    %v1743 = vadd.f32 %v1639, %v1742
    %v1744 = vpop.f32.mrb[0].mxu0
    %1745 = vdwg.mxu0
    %1746 = vmatprep.subr.mxu0 0.0
    %v1747 = vand.u32 %v1377, 4294901760
    %1748 = vmatpush1.msra.mxu0 %v1747
    %1749 = vmatprep.subr.mxu0 0.0
    %v1750 = vand.u32 %v1378, 4294901760
    %1751 = vmatpush1.msra.mxu0 %v1750
    %1752 = vmatprep.subr.mxu0 0.0
    %v1753 = vand.u32 %v1379, 4294901760
    %1754 = vmatpush1.msra.mxu0 %v1753
    %1755 = vmatprep.subr.mxu0 0.0
    %v1756 = vand.u32 %v1380, 4294901760
    %1757 = vmatpush1.msra.mxu0 %v1756
    %1758 = vmatprep.subr.mxu0 0.0
    %v1759 = vand.u32 %v1381, 4294901760
    %1760 = vmatpush1.msra.mxu0 %v1759
    %1761 = vmatprep.subr.mxu0 0.0
    %v1762 = vand.u32 %v1382, 4294901760
    %1763 = vmatpush1.msra.mxu0 %v1762
    %1764 = vmatprep.subr.mxu0 0.0
    %v1765 = vand.u32 %v1383, 4294901760
    %1766 = vmatpush1.msra.mxu0 %v1765
    %1767 = vmatprep.subr.mxu0 0.0
    %v1768 = vand.u32 %v1384, 4294901760
    %1769 = vmatpush1.msra.mxu0 %v1768
    %1770 = vmatprep.subr.mxu0 0.0
    %v1771 = vand.u32 %v1385, 4294901760
    %1772 = vmatpush1.msra.mxu0 %v1771
    %1773 = vmatprep.subr.mxu0 0.0
    %v1774 = vand.u32 %v1386, 4294901760
    %1775 = vmatpush1.msra.mxu0 %v1774
    %1776 = vmatprep.subr.mxu0 0.0
    %v1777 = vand.u32 %v1387, 4294901760
    %1778 = vmatpush1.msra.mxu0 %v1777
    %1779 = vmatprep.subr.mxu0 0.0
    %v1780 = vand.u32 %v1388, 4294901760
    %1781 = vmatpush1.msra.mxu0 %v1780
    %1782 = vmatprep.subr.mxu0 0.0
    %v1783 = vand.u32 %v1389, 4294901760
    %1784 = vmatpush1.msra.mxu0 %v1783
    %1785 = vmatprep.subr.mxu0 0.0
    %v1786 = vand.u32 %v1390, 4294901760
    %1787 = vmatpush1.msra.mxu0 %v1786
    %1788 = vmatprep.subr.mxu0 0.0
    %v1789 = vand.u32 %v1391, 4294901760
    %1790 = vmatpush1.msra.mxu0 %v1789
    %1791 = vmatprep.subr.mxu0 0.0
    %v1792 = vand.u32 %v1392, 4294901760
    %1793 = vmatpush1.msra.mxu0 %v1792
    %1794 = vmatprep.subr.mxu0 0.0
    %1795 = vmatpush1.msra.mxu0 0.0
    %1796 = vmatprep.subr.mxu0 0.0
    %1797 = vmatpush1.msra.mxu0 0.0
    %1798 = vmatprep.subr.mxu0 0.0
    %1799 = vmatpush1.msra.mxu0 0.0
    %1800 = vmatprep.subr.mxu0 0.0
    %1801 = vmatpush1.msra.mxu0 0.0
    %1802 = vmatprep.subr.mxu0 0.0
    %1803 = vmatpush1.msra.mxu0 0.0
    %1804 = vmatprep.subr.mxu0 0.0
    %1805 = vmatpush1.msra.mxu0 0.0
    %1806 = vmatprep.subr.mxu0 0.0
    %1807 = vmatpush1.msra.mxu0 0.0
    %1808 = vmatprep.subr.mxu0 0.0
    %1809 = vmatpush1.msra.mxu0 0.0
    %1810 = vmatprep.subr.mxu0 0.0
    %1811 = vmatpush1.msra.mxu0 0.0
    %1812 = vmatprep.subr.mxu0 0.0
    %1813 = vmatpush1.msra.mxu0 0.0
    %1814 = vmatprep.subr.mxu0 0.0
    %1815 = vmatpush1.msra.mxu0 0.0
    %1816 = vmatprep.subr.mxu0 0.0
    %1817 = vmatpush1.msra.mxu0 0.0
    %1818 = vmatprep.subr.mxu0 0.0
    %1819 = vmatpush1.msra.mxu0 0.0
    %1820 = vmatprep.subr.mxu0 0.0
    %1821 = vmatpush1.msra.mxu0 0.0
    %1822 = vmatprep.subr.mxu0 0.0
    %1823 = vmatpush1.msra.mxu0 0.0
    %1824 = vmatprep.subr.mxu0 0.0
    %1825 = vmatpush1.msra.mxu0 0.0
    %1826 = vmatprep.mubr.f32.mxu0 0.0
    %v1827 = vand.u32 %v1376, 4294901760
    %v1828 = vsub.f32 %v1376, %v1827
    %v1829 = vand.u32 %v1828, 4294901760
    %1830 = vmatmul.mubr.f32.gmra.mrb[0].mxu0 %v1829
    %v1831 = vpop.f32.mrb[0].mxu0
    %v1832 = vadd.f32 %v1743, %v1831
    %v1833 = vpop.f32.mrb[0].mxu0
    %1834 = vdwg.mxu0
    %1835 = vmatprep.subr.mxu0 0.0
    %v1836 = vand.u32 %v1377, 4294901760
    %v1837 = vsub.f32 %v1377, %v1836
    %v1838 = vand.u32 %v1837, 4294901760
    %1839 = vmatpush1.msra.mxu0 %v1838
    %1840 = vmatprep.subr.mxu0 0.0
    %v1841 = vand.u32 %v1378, 4294901760
    %v1842 = vsub.f32 %v1378, %v1841
    %v1843 = vand.u32 %v1842, 4294901760
    %1844 = vmatpush1.msra.mxu0 %v1843
    %1845 = vmatprep.subr.mxu0 0.0
    %v1846 = vand.u32 %v1379, 4294901760
    %v1847 = vsub.f32 %v1379, %v1846
    %v1848 = vand.u32 %v1847, 4294901760
    %1849 = vmatpush1.msra.mxu0 %v1848
    %1850 = vmatprep.subr.mxu0 0.0
    %v1851 = vand.u32 %v1380, 4294901760
    %v1852 = vsub.f32 %v1380, %v1851
    %v1853 = vand.u32 %v1852, 4294901760
    %1854 = vmatpush1.msra.mxu0 %v1853
    %1855 = vmatprep.subr.mxu0 0.0
    %v1856 = vand.u32 %v1381, 4294901760
    %v1857 = vsub.f32 %v1381, %v1856
    %v1858 = vand.u32 %v1857, 4294901760
    %1859 = vmatpush1.msra.mxu0 %v1858
    %1860 = vmatprep.subr.mxu0 0.0
    %v1861 = vand.u32 %v1382, 4294901760
    %v1862 = vsub.f32 %v1382, %v1861
    %v1863 = vand.u32 %v1862, 4294901760
    %1864 = vmatpush1.msra.mxu0 %v1863
    %1865 = vmatprep.subr.mxu0 0.0
    %v1866 = vand.u32 %v1383, 4294901760
    %v1867 = vsub.f32 %v1383, %v1866
    %v1868 = vand.u32 %v1867, 4294901760
    %1869 = vmatpush1.msra.mxu0 %v1868
    %1870 = vmatprep.subr.mxu0 0.0
    %v1871 = vand.u32 %v1384, 4294901760
    %v1872 = vsub.f32 %v1384, %v1871
    %v1873 = vand.u32 %v1872, 4294901760
    %1874 = vmatpush1.msra.mxu0 %v1873
    %1875 = vmatprep.subr.mxu0 0.0
    %v1876 = vand.u32 %v1385, 4294901760
    %v1877 = vsub.f32 %v1385, %v1876
    %v1878 = vand.u32 %v1877, 4294901760
    %1879 = vmatpush1.msra.mxu0 %v1878
    %1880 = vmatprep.subr.mxu0 0.0
    %v1881 = vand.u32 %v1386, 4294901760
    %v1882 = vsub.f32 %v1386, %v1881
    %v1883 = vand.u32 %v1882, 4294901760
    %1884 = vmatpush1.msra.mxu0 %v1883
    %1885 = vmatprep.subr.mxu0 0.0
    %v1886 = vand.u32 %v1387, 4294901760
    %v1887 = vsub.f32 %v1387, %v1886
    %v1888 = vand.u32 %v1887, 4294901760
    %1889 = vmatpush1.msra.mxu0 %v1888
    %1890 = vmatprep.subr.mxu0 0.0
    %v1891 = vand.u32 %v1388, 4294901760
    %v1892 = vsub.f32 %v1388, %v1891
    %v1893 = vand.u32 %v1892, 4294901760
    %1894 = vmatpush1.msra.mxu0 %v1893
    %1895 = vmatprep.subr.mxu0 0.0
    %v1896 = vand.u32 %v1389, 4294901760
    %v1897 = vsub.f32 %v1389, %v1896
    %v1898 = vand.u32 %v1897, 4294901760
    %1899 = vmatpush1.msra.mxu0 %v1898
    %1900 = vmatprep.subr.mxu0 0.0
    %v1901 = vand.u32 %v1390, 4294901760
    %v1902 = vsub.f32 %v1390, %v1901
    %v1903 = vand.u32 %v1902, 4294901760
    %1904 = vmatpush1.msra.mxu0 %v1903
    %1905 = vmatprep.subr.mxu0 0.0
    %v1906 = vand.u32 %v1391, 4294901760
    %v1907 = vsub.f32 %v1391, %v1906
    %v1908 = vand.u32 %v1907, 4294901760
    %1909 = vmatpush1.msra.mxu0 %v1908
    %1910 = vmatprep.subr.mxu0 0.0
    %v1911 = vand.u32 %v1392, 4294901760
    %v1912 = vsub.f32 %v1392, %v1911
    %v1913 = vand.u32 %v1912, 4294901760
    %1914 = vmatpush1.msra.mxu0 %v1913
    %1915 = vmatprep.subr.mxu0 0.0
    %1916 = vmatpush1.msra.mxu0 0.0
    %1917 = vmatprep.subr.mxu0 0.0
    %1918 = vmatpush1.msra.mxu0 0.0
    %1919 = vmatprep.subr.mxu0 0.0
    %1920 = vmatpush1.msra.mxu0 0.0
    %1921 = vmatprep.subr.mxu0 0.0
    %1922 = vmatpush1.msra.mxu0 0.0
    %1923 = vmatprep.subr.mxu0 0.0
    %1924 = vmatpush1.msra.mxu0 0.0
    %1925 = vmatprep.subr.mxu0 0.0
    %1926 = vmatpush1.msra.mxu0 0.0
    %1927 = vmatprep.subr.mxu0 0.0
    %1928 = vmatpush1.msra.mxu0 0.0
    %1929 = vmatprep.subr.mxu0 0.0
    %1930 = vmatpush1.msra.mxu0 0.0
    %1931 = vmatprep.subr.mxu0 0.0
    %1932 = vmatpush1.msra.mxu0 0.0
    %1933 = vmatprep.subr.mxu0 0.0
    %1934 = vmatpush1.msra.mxu0 0.0
    %1935 = vmatprep.subr.mxu0 0.0
    %1936 = vmatpush1.msra.mxu0 0.0
    %1937 = vmatprep.subr.mxu0 0.0
    %1938 = vmatpush1.msra.mxu0 0.0
    %1939 = vmatprep.subr.mxu0 0.0
    %1940 = vmatpush1.msra.mxu0 0.0
    %1941 = vmatprep.subr.mxu0 0.0
    %1942 = vmatpush1.msra.mxu0 0.0
    %1943 = vmatprep.subr.mxu0 0.0
    %1944 = vmatpush1.msra.mxu0 0.0
    %1945 = vmatprep.subr.mxu0 0.0
    %1946 = vmatpush1.msra.mxu0 0.0
    %1947 = vmatprep.mubr.f32.mxu0 0.0
    %v1948 = vand.u32 %v1376, 4294901760
    %1949 = vmatmul.mubr.f32.gmra.mrb[0].mxu0 %v1948
    %v1950 = vpop.f32.mrb[0].mxu0
    %v1951 = vadd.f32 %v1832, %v1950
    %v1952 = vpop.f32.mrb[0].mxu0
    %1953 = vdwg.mxu0
    %1954 = vmatprep.subr.mxu0 0.0
    %v1955 = vand.u32 %v1377, 4294901760
    %1956 = vmatpush1.msra.mxu0 %v1955
    %1957 = vmatprep.subr.mxu0 0.0
    %v1958 = vand.u32 %v1378, 4294901760
    %1959 = vmatpush1.msra.mxu0 %v1958
    %1960 = vmatprep.subr.mxu0 0.0
    %v1961 = vand.u32 %v1379, 4294901760
    %1962 = vmatpush1.msra.mxu0 %v1961
    %1963 = vmatprep.subr.mxu0 0.0
    %v1964 = vand.u32 %v1380, 4294901760
    %1965 = vmatpush1.msra.mxu0 %v1964
    %1966 = vmatprep.subr.mxu0 0.0
    %v1967 = vand.u32 %v1381, 4294901760
    %1968 = vmatpush1.msra.mxu0 %v1967
    %1969 = vmatprep.subr.mxu0 0.0
    %v1970 = vand.u32 %v1382, 4294901760
    %1971 = vmatpush1.msra.mxu0 %v1970
    %1972 = vmatprep.subr.mxu0 0.0
    %v1973 = vand.u32 %v1383, 4294901760
    %1974 = vmatpush1.msra.mxu0 %v1973
    %1975 = vmatprep.subr.mxu0 0.0
    %v1976 = vand.u32 %v1384, 4294901760
    %1977 = vmatpush1.msra.mxu0 %v1976
    %1978 = vmatprep.subr.mxu0 0.0
    %v1979 = vand.u32 %v1385, 4294901760
    %1980 = vmatpush1.msra.mxu0 %v1979
    %1981 = vmatprep.subr.mxu0 0.0
    %v1982 = vand.u32 %v1386, 4294901760
    %1983 = vmatpush1.msra.mxu0 %v1982
    %1984 = vmatprep.subr.mxu0 0.0
    %v1985 = vand.u32 %v1387, 4294901760
    %1986 = vmatpush1.msra.mxu0 %v1985
    %1987 = vmatprep.subr.mxu0 0.0
    %v1988 = vand.u32 %v1388, 4294901760
    %1989 = vmatpush1.msra.mxu0 %v1988
    %1990 = vmatprep.subr.mxu0 0.0
    %v1991 = vand.u32 %v1389, 4294901760
    %1992 = vmatpush1.msra.mxu0 %v1991
    %1993 = vmatprep.subr.mxu0 0.0
    %v1994 = vand.u32 %v1390, 4294901760
    %1995 = vmatpush1.msra.mxu0 %v1994
    %1996 = vmatprep.subr.mxu0 0.0
    %v1997 = vand.u32 %v1391, 4294901760
    %1998 = vmatpush1.msra.mxu0 %v1997
    %1999 = vmatprep.subr.mxu0 0.0
    %v2000 = vand.u32 %v1392, 4294901760
    %2001 = vmatpush1.msra.mxu0 %v2000
    %2002 = vmatprep.subr.mxu0 0.0
    %2003 = vmatpush1.msra.mxu0 0.0
    %2004 = vmatprep.subr.mxu0 0.0
    %2005 = vmatpush1.msra.mxu0 0.0
    %2006 = vmatprep.subr.mxu0 0.0
    %2007 = vmatpush1.msra.mxu0 0.0
    %2008 = vmatprep.subr.mxu0 0.0
    %2009 = vmatpush1.msra.mxu0 0.0
    %2010 = vmatprep.subr.mxu0 0.0
    %2011 = vmatpush1.msra.mxu0 0.0
    %2012 = vmatprep.subr.mxu0 0.0
    %2013 = vmatpush1.msra.mxu0 0.0
    %2014 = vmatprep.subr.mxu0 0.0
    %2015 = vmatpush1.msra.mxu0 0.0
    %2016 = vmatprep.subr.mxu0 0.0
    %2017 = vmatpush1.msra.mxu0 0.0
    %2018 = vmatprep.subr.mxu0 0.0
    %2019 = vmatpush1.msra.mxu0 0.0
    %2020 = vmatprep.subr.mxu0 0.0
    %2021 = vmatpush1.msra.mxu0 0.0
    %2022 = vmatprep.subr.mxu0 0.0
    %2023 = vmatpush1.msra.mxu0 0.0
    %2024 = vmatprep.subr.mxu0 0.0
    %2025 = vmatpush1.msra.mxu0 0.0
    %2026 = vmatprep.subr.mxu0 0.0
    %2027 = vmatpush1.msra.mxu0 0.0
    %2028 = vmatprep.subr.mxu0 0.0
    %2029 = vmatpush1.msra.mxu0 0.0
    %2030 = vmatprep.subr.mxu0 0.0
    %2031 = vmatpush1.msra.mxu0 0.0
    %2032 = vmatprep.subr.mxu0 0.0
    %2033 = vmatpush1.msra.mxu0 0.0
    %2034 = vmatprep.mubr.f32.mxu0 0.0
    %v2035 = vand.u32 %v1376, 4294901760
    %2036 = vmatmul.mubr.f32.gmra.mrb[0].mxu0 %v2035
    %v2037 = vpop.f32.mrb[0].mxu0
    %v2038 = vadd.f32 %v1951, %v2037
    %v2039 = vpop.f32.mrb[0].mxu0
    %2040 = vdwg.mxu0
    %2041 = vst [vmem:[#allocation10] sm:$0xff] %v2038
    // Predicated region
    $region46: #{tpu_custom_call.1} parent=1 // pred_check
      _
    $region47: #{tpu_custom_call.1} parent=1 // pred_check_branch
      %2043 = sbr.rel (0) target = $region49
    $region48: #{tpu_custom_call.1} parent=1 // pred_region
      %s2045 = ssub.s32 128, 128
      %2046 = vsyncadd [#allocation4], %s2045
      %s2048 = sshll.u32 [#allocation10], 4
      %s2049 = int_to_ptr.vmem [resolvable:$true] %s2048
      %2051 = dma.vmem_to_hbm [thread:$0]  %s2049, 128, %s7, [#allocation4]
    $region49: #{tpu_custom_call.1} parent=1 // pred_fallthru
      _
    // Predicated region
    $region50: #{tpu_custom_call.1} parent=1 // pred_check
      _
    $region51: #{tpu_custom_call.1} parent=1 // pred_check_branch
      %2053 = sbr.rel (0) target = $region53
    $region52: #{tpu_custom_call.1} parent=1 // pred_region
      %2054 = dma.done [#allocation4], 128
    $region53: #{tpu_custom_call.1} parent=1 // pred_fallthru
      _
    %2055 = vsyncpa [#allocation3], 1
    %2056 = vsyncpa [#allocation6], 1
    %2057 = vsyncpa [#allocation9], 1
    %2058 = vsyncpa [#allocation4], 1

</llo_original>
